<compile_context>
chip_gen: v7x
topology: tpu7x:2x2x1
jax: 0.10.0
libtpu: 0.0.40
codegen_flags: <defaults>
</compile_context>

<pallas_src>
import jax
import jax.numpy as jnp
import numpy as np
from jax.experimental import pallas as pl
from jax.experimental.pallas import tpu as pltpu

# ---------------- KANLinear hyper-parameters (efficient-kan defaults) ----------------
GRID_SIZE = 5
SPLINE_ORDER = 3
GRID_RANGE = (-1.0, 1.0)
G = GRID_SIZE + SPLINE_ORDER                      # spline basis functions per input = 8
_H = (GRID_RANGE[1] - GRID_RANGE[0]) / GRID_SIZE  # knot spacing = 0.4
INV_H = 1.0 / _H
# 12 knots: grid_range[0] + h*t for t in [-spline_order, grid_size+spline_order]
GRID_VALS = tuple(GRID_RANGE[0] + _H * t
                  for t in range(-SPLINE_ORDER, GRID_SIZE + SPLINE_ORDER + 1))


# ------------------------------- Pallas kernel ---------------------------------------
def kan_conv_kernel(x_ref, w_ref, b_ref, o_ref):
    # x_ref: (D, TN)           lane-dense patch values, D = C_in * K * K
    # w_ref: (1+G, C_out, D)   [0] = reduced base weights, [1+g] = reduced spline weights
    # b_ref: (C_out, 1)        conv bias
    # o_ref: (C_out, TN)       lane-dense output tile
    x = x_ref[...]

    # SiLU(x) = x * sigmoid(x).  Exact divide: the approx EUP reciprocal costs
    # ~9e-3 absolute output error after the 36-term contraction (tolerance 2e-3).
    act = x / (1.0 + jnp.exp(-x))
    acc = jnp.dot(w_ref[0], act, preferred_element_type=jnp.float32)   # (C_out, TN)

    # Cubic B-spline bases on the uniform knot grid, closed form:
    #   B_t(x) = beta((x - g[t+2]) / h), beta = centered cardinal cubic B-spline
    #     beta(r) = 2/3 - a^2 + a^3/2            for a = |r| < 1
    #             = (2 - a)^3 / 6                for 1 <= a < 2
    #             = 0                            otherwise
    # Exactly equals the unrolled Cox-de Boor recursion (incl. boundary behaviour:
    # zero outside [g[0], g[11])).  Each basis is consumed immediately by an
    # accumulating matmul, keeping the live vreg set tiny (no spills).
    s = (x - GRID_VALS[2]) * INV_H
    for t in range(G):
        r = s - float(t)
        a = jnp.abs(r)
        a2 = a * a
        inner = (0.5 * a - 1.0) * a2 + (2.0 / 3.0)          # 2/3 - a^2 + a^3/2
        tma = jnp.maximum(2.0 - a, 0.0)
        outer = (tma * tma) * (tma * (1.0 / 6.0))           # (2-a)^3/6, 0 for a>=2
        basis = jnp.where(a < 1.0, inner, outer)            # (D, TN)
        acc = acc + jnp.dot(w_ref[1 + t], basis, preferred_element_type=jnp.float32)

    o_ref[...] = acc + b_ref[...]


# ------------------------------- wrapper (glue) ---------------------------------------
def _im2col(x, K, stride, padding, OH, OW):
    if padding > 0:
        x = jnp.pad(x, ((0, 0), (0, 0), (padding, padding), (padding, padding)))
    cols = []
    for kh in range(K):
        for kw in range(K):
            cols.append(x[:, :,
                          kh:kh + (OH - 1) * stride + 1:stride,
                          kw:kw + (OW - 1) * stride + 1:stride])
    # p = kh*K + kw  (matches rearrange 'b h w -> b (h w)')
    return jnp.stack(cols, axis=-1)  # (B, C_in, OH, OW, K*K)


def kan_conv2d_pallas(x, base_w, spline_w, spline_scaler, bias_w, *,
                      kernel_size, stride, padding, out_channels, tile_n=256):
    B, C_in, H, W = x.shape
    K = kernel_size
    K2 = K * K
    OH = (H - K + 2 * padding) // stride + 1
    OW = (W - K + 2 * padding) // stride + 1
    D = C_in * K2
    C_out = out_channels

    # TODO(synk): fold im2col into the Pallas pipeline with overlapping BlockSpecs over
    # an NHWC input to avoid the materialized patch tensor on HBM (matters on v5e for
    # large images; DMA is nowhere near a bottleneck at these sizes).
    patches = _im2col(x, K, stride, padding, OH, OW)                 # (B,Ci,OH,OW,K2)
    feat = patches.transpose(0, 2, 3, 1, 4).reshape(B * OH * OW, D)
    feat = feat.T.astype(jnp.float32)                                # (D, N) lane-dense

    # Fold "sum over KANLinear outputs" into the weights (exact up to fp reassociation).
    scaled_spline = spline_w * spline_scaler[..., None]              # (Co*Ci,K2,K2,G)
    wb = base_w.sum(axis=1).reshape(C_out, D)                        # (Co, D)
    ws = scaled_spline.sum(axis=1).reshape(C_out, C_in, K2, G)       # (Co, Ci, K2, G)
    ws = ws.transpose(3, 0, 1, 2).reshape(G, C_out, D)               # (G, Co, D)
    w_full = jnp.concatenate([wb[None], ws], axis=0).astype(jnp.float32)  # (1+G,Co,D)
    bias2d = bias_w.reshape(C_out, 1).astype(jnp.float32)

    N = B * OH * OW
    N_pad = ((N + tile_n - 1) // tile_n) * tile_n
    if N_pad != N:
        feat = jnp.pad(feat, ((0, 0), (0, N_pad - N)))

    out_flat = pl.pallas_call(
        kan_conv_kernel,
        out_shape=jax.ShapeDtypeStruct((C_out, N_pad), jnp.float32),
        grid_spec=pltpu.PrefetchScalarGridSpec(
            num_scalar_prefetch=0,
            grid=(N_pad // tile_n,),
            in_specs=[
                pl.BlockSpec((D, tile_n), lambda n: (0, n)),
                pl.BlockSpec((1 + G, C_out, D), lambda n: (0, 0, 0)),
                pl.BlockSpec((C_out, 1), lambda n: (0, 0)),
            ],
            out_specs=pl.BlockSpec((C_out, tile_n), lambda n: (0, n)),
        ),
        compiler_params=pltpu.CompilerParams(dimension_semantics=("parallel",)),
    )(feat, w_full, bias2d)

    out = out_flat[:, :N].reshape(C_out, B, OH, OW).transpose(1, 0, 2, 3)  # NCHW
    return out


# ------------------------- pure-JAX reference (torch-loop semantics) ------------------
def _silu_ref(x):
    return x / (1.0 + jnp.exp(-x))


def kan_conv2d_reference(x, base_w, spline_w, spline_scaler, bias_w, *,
                         kernel_size, stride, padding, out_channels):
    B, C_in, H, W = x.shape
    K = kernel_size
    K2 = K * K
    OH = (H - K + 2 * padding) // stride + 1
    OW = (W - K + 2 * padding) // stride + 1
    patches = _im2col(x, K, stride, padding, OH, OW)  # (B,Ci,OH,OW,K2)
    grid = jnp.asarray(GRID_VALS, jnp.float32)
    scaled = spline_w * spline_scaler[..., None]
    out = jnp.zeros((B, out_channels, OH, OW), jnp.float32)
    for i in range(out_channels):
        acc = jnp.zeros((B, OH, OW), jnp.float32)
        for j in range(C_in):
            flat = patches[:, j].reshape(-1, K2)
            act = _silu_ref(flat)
            base_out = act @ base_w[i * C_in + j].T
            xg = flat[..., None]
            bases = ((xg >= grid[:-1]) & (xg < grid[1:])).astype(flat.dtype)
            for k in range(1, SPLINE_ORDER + 1):
                bases = ((xg - grid[:-(k + 1)]) / (grid[k:-1] - grid[:-(k + 1)]) * bases[..., :-1]
                         + (grid[k + 1:] - xg) / (grid[k + 1:] - grid[1:-k]) * bases[..., 1:])
            sw = scaled[i * C_in + j].reshape(K2, K2 * G)
            spline_out = bases.reshape(-1, K2 * G) @ sw.T
            acc = acc + (base_out + spline_out).sum(-1).reshape(B, OH, OW)
        acc = acc + bias_w[i]
        out = out.at[:, i].set(acc)
    return out


# ------------------------------------- main -------------------------------------------
if __name__ == "__main__":
    B, C_in, C_out = 2, 4, 4
    H = W = 16
    K = 3
    stride, padding = 1, 1
    K2 = K * K

    key = jax.random.PRNGKey(0)
    k_x, k_bw, k_sw, k_ss, k_b = jax.random.split(key, 5)
    # Deterministic synthetic parameters (shapes match the module's __init__;
    # one KANLinear(K2 -> K2) per (out_channel, in_channel) pair).
    x = jax.random.normal(k_x, (B, C_in, H, W), jnp.float32)
    base_w = 0.1 * jax.random.normal(k_bw, (C_out * C_in, K2, K2), jnp.float32)
    spline_w = 0.1 * jax.random.normal(k_sw, (C_out * C_in, K2, K2, G), jnp.float32)
    spline_scaler = 1.0 + 0.1 * jax.random.normal(k_ss, (C_out * C_in, K2, K2), jnp.float32)
    bias_w = jax.random.normal(k_b, (C_out,), jnp.float32)

    out = kan_conv2d_pallas(x, base_w, spline_w, spline_scaler, bias_w,
                            kernel_size=K, stride=stride, padding=padding,
                            out_channels=C_out)
    out = jax.block_until_ready(out)

    OH = (H - K + 2 * padding) // stride + 1
    OW = (W - K + 2 * padding) // stride + 1
    assert out.shape == (B, C_out, OH, OW), out.shape

    ref = kan_conv2d_reference(x, base_w, spline_w, spline_scaler, bias_w,
                               kernel_size=K, stride=stride, padding=padding,
                               out_channels=C_out)
    np.testing.assert_allclose(np.asarray(out), np.asarray(ref), rtol=2e-3, atol=2e-3)

    print("KERNEL_OK")
</pallas_src>

<mosaic_0001>
module attributes {stable_mosaic.version = 11 : i64} {
  func.func @kan_conv_kernel(%arg0: i32, %arg1: memref<36x256xf32, #tpu.memory_space<vmem>>, %arg2: memref<9x4x36xf32, #tpu.memory_space<vmem>>, %arg3: memref<4x1xf32, #tpu.memory_space<vmem>>, %arg4: memref<4x256xf32, #tpu.memory_space<vmem>>) attributes {dimension_semantics = [#tpu.dimension_semantics<parallel>], iteration_bounds = array<i64: 2>, scalar_prefetch = 0 : i64, scratch_operands = 0 : i64, tpu.core_type = #tpu.core_type<tc>, window_params = [{transform_indices = @transform_0, window_bounds = array<i64: 36, 256>}, {pipeline_mode = #tpu.pipeline_mode<synchronous>, transform_indices = @transform_1, window_bounds = array<i64: 9, 4, 36>}, {pipeline_mode = #tpu.pipeline_mode<synchronous>, transform_indices = @transform_2, window_bounds = array<i64: 4, 1>}, {transform_indices = @transform_3, window_bounds = array<i64: 4, 256>}]} {
    %c0 = arith.constant 0 : index
    %c0_0 = arith.constant 0 : index
    %0 = vector.load %arg1[%c0, %c0_0] : memref<36x256xf32, #tpu.memory_space<vmem>>, vector<36x256xf32>
    %cst = arith.constant 0.000000e+00 : f32
    %1 = vector.broadcast %cst : f32 to vector<36x256xf32>
    %2 = arith.subf %1, %0 : vector<36x256xf32>
    %3 = math.exp %2 : vector<36x256xf32>
    %cst_1 = arith.constant 1.000000e+00 : f32
    %4 = vector.broadcast %cst_1 : f32 to vector<36x256xf32>
    %5 = arith.addf %4, %3 : vector<36x256xf32>
    %6 = arith.divf %0, %5 : vector<36x256xf32>
    %c0_2 = arith.constant 0 : index
    %c0_3 = arith.constant 0 : index
    %c0_4 = arith.constant 0 : index
    %7 = vector.load %arg2[%c0_2, %c0_3, %c0_4] : memref<9x4x36xf32, #tpu.memory_space<vmem>>, vector<1x4x36xf32>
    %8 = vector.shape_cast %7 : vector<1x4x36xf32> to vector<4x36xf32>
    %cst_5 = arith.constant dense<0.000000e+00> : vector<4x256xf32>
    %9 = tpu.matmul %8, %6, %cst_5 {dimension_numbers = #tpu.dot_dimension_numbers<[1], [0], [0], [1], [0, 0, 1, 1], [], []>} : vector<4x36xf32>, vector<36x256xf32>, vector<4x256xf32> -> vector<4x256xf32>
    %cst_6 = arith.constant -1.400000e+00 : f32
    %10 = vector.broadcast %cst_6 : f32 to vector<36x256xf32>
    %11 = arith.subf %0, %10 : vector<36x256xf32>
    %cst_7 = arith.constant 2.500000e+00 : f32
    %12 = vector.broadcast %cst_7 : f32 to vector<36x256xf32>
    %13 = arith.mulf %11, %12 : vector<36x256xf32>
    %cst_8 = arith.constant 0.000000e+00 : f32
    %14 = vector.broadcast %cst_8 : f32 to vector<36x256xf32>
    %15 = arith.subf %13, %14 : vector<36x256xf32>
    %16 = math.absf %15 : vector<36x256xf32>
    %17 = arith.mulf %16, %16 : vector<36x256xf32>
    %cst_9 = arith.constant 5.000000e-01 : f32
    %18 = vector.broadcast %cst_9 : f32 to vector<36x256xf32>
    %19 = arith.mulf %18, %16 : vector<36x256xf32>
    %cst_10 = arith.constant 1.000000e+00 : f32
    %20 = vector.broadcast %cst_10 : f32 to vector<36x256xf32>
    %21 = arith.subf %19, %20 : vector<36x256xf32>
    %22 = arith.mulf %21, %17 : vector<36x256xf32>
    %cst_11 = arith.constant 0.666666686 : f32
    %23 = vector.broadcast %cst_11 : f32 to vector<36x256xf32>
    %24 = arith.addf %22, %23 : vector<36x256xf32>
    %cst_12 = arith.constant 2.000000e+00 : f32
    %25 = vector.broadcast %cst_12 : f32 to vector<36x256xf32>
    %26 = arith.subf %25, %16 : vector<36x256xf32>
    %cst_13 = arith.constant 0.000000e+00 : f32
    %27 = vector.broadcast %cst_13 : f32 to vector<36x256xf32>
    %28 = arith.maximumf %26, %27 : vector<36x256xf32>
    %29 = arith.mulf %28, %28 : vector<36x256xf32>
    %cst_14 = arith.constant 0.166666672 : f32
    %30 = vector.broadcast %cst_14 : f32 to vector<36x256xf32>
    %31 = arith.mulf %28, %30 : vector<36x256xf32>
    %32 = arith.mulf %29, %31 : vector<36x256xf32>
    %cst_15 = arith.constant 1.000000e+00 : f32
    %33 = vector.broadcast %cst_15 : f32 to vector<36x256xf32>
    %34 = arith.cmpf olt, %16, %33 : vector<36x256xf32>
    %35 = arith.select %34, %24, %32 : vector<36x256xi1>, vector<36x256xf32>
    %c1 = arith.constant 1 : index
    %c0_16 = arith.constant 0 : index
    %c0_17 = arith.constant 0 : index
    %36 = vector.load %arg2[%c1, %c0_16, %c0_17] : memref<9x4x36xf32, #tpu.memory_space<vmem>>, vector<1x4x36xf32>
    %37 = vector.shape_cast %36 : vector<1x4x36xf32> to vector<4x36xf32>
    %cst_18 = arith.constant dense<0.000000e+00> : vector<4x256xf32>
    %38 = tpu.matmul %37, %35, %cst_18 {dimension_numbers = #tpu.dot_dimension_numbers<[1], [0], [0], [1], [0, 0, 1, 1], [], []>} : vector<4x36xf32>, vector<36x256xf32>, vector<4x256xf32> -> vector<4x256xf32>
    %39 = arith.addf %9, %38 : vector<4x256xf32>
    %cst_19 = arith.constant 1.000000e+00 : f32
    %40 = vector.broadcast %cst_19 : f32 to vector<36x256xf32>
    %41 = arith.subf %13, %40 : vector<36x256xf32>
    %42 = math.absf %41 : vector<36x256xf32>
    %43 = arith.mulf %42, %42 : vector<36x256xf32>
    %cst_20 = arith.constant 5.000000e-01 : f32
    %44 = vector.broadcast %cst_20 : f32 to vector<36x256xf32>
    %45 = arith.mulf %44, %42 : vector<36x256xf32>
    %cst_21 = arith.constant 1.000000e+00 : f32
    %46 = vector.broadcast %cst_21 : f32 to vector<36x256xf32>
    %47 = arith.subf %45, %46 : vector<36x256xf32>
    %48 = arith.mulf %47, %43 : vector<36x256xf32>
    %cst_22 = arith.constant 0.666666686 : f32
    %49 = vector.broadcast %cst_22 : f32 to vector<36x256xf32>
    %50 = arith.addf %48, %49 : vector<36x256xf32>
    %cst_23 = arith.constant 2.000000e+00 : f32
    %51 = vector.broadcast %cst_23 : f32 to vector<36x256xf32>
    %52 = arith.subf %51, %42 : vector<36x256xf32>
    %cst_24 = arith.constant 0.000000e+00 : f32
    %53 = vector.broadcast %cst_24 : f32 to vector<36x256xf32>
    %54 = arith.maximumf %52, %53 : vector<36x256xf32>
    %55 = arith.mulf %54, %54 : vector<36x256xf32>
    %cst_25 = arith.constant 0.166666672 : f32
    %56 = vector.broadcast %cst_25 : f32 to vector<36x256xf32>
    %57 = arith.mulf %54, %56 : vector<36x256xf32>
    %58 = arith.mulf %55, %57 : vector<36x256xf32>
    %cst_26 = arith.constant 1.000000e+00 : f32
    %59 = vector.broadcast %cst_26 : f32 to vector<36x256xf32>
    %60 = arith.cmpf olt, %42, %59 : vector<36x256xf32>
    %61 = arith.select %60, %50, %58 : vector<36x256xi1>, vector<36x256xf32>
    %c2 = arith.constant 2 : index
    %c0_27 = arith.constant 0 : index
    %c0_28 = arith.constant 0 : index
    %62 = vector.load %arg2[%c2, %c0_27, %c0_28] : memref<9x4x36xf32, #tpu.memory_space<vmem>>, vector<1x4x36xf32>
    %63 = vector.shape_cast %62 : vector<1x4x36xf32> to vector<4x36xf32>
    %cst_29 = arith.constant dense<0.000000e+00> : vector<4x256xf32>
    %64 = tpu.matmul %63, %61, %cst_29 {dimension_numbers = #tpu.dot_dimension_numbers<[1], [0], [0], [1], [0, 0, 1, 1], [], []>} : vector<4x36xf32>, vector<36x256xf32>, vector<4x256xf32> -> vector<4x256xf32>
    %65 = arith.addf %39, %64 : vector<4x256xf32>
    %cst_30 = arith.constant 2.000000e+00 : f32
    %66 = vector.broadcast %cst_30 : f32 to vector<36x256xf32>
    %67 = arith.subf %13, %66 : vector<36x256xf32>
    %68 = math.absf %67 : vector<36x256xf32>
    %69 = arith.mulf %68, %68 : vector<36x256xf32>
    %cst_31 = arith.constant 5.000000e-01 : f32
    %70 = vector.broadcast %cst_31 : f32 to vector<36x256xf32>
    %71 = arith.mulf %70, %68 : vector<36x256xf32>
    %cst_32 = arith.constant 1.000000e+00 : f32
    %72 = vector.broadcast %cst_32 : f32 to vector<36x256xf32>
    %73 = arith.subf %71, %72 : vector<36x256xf32>
    %74 = arith.mulf %73, %69 : vector<36x256xf32>
    %cst_33 = arith.constant 0.666666686 : f32
    %75 = vector.broadcast %cst_33 : f32 to vector<36x256xf32>
    %76 = arith.addf %74, %75 : vector<36x256xf32>
    %cst_34 = arith.constant 2.000000e+00 : f32
    %77 = vector.broadcast %cst_34 : f32 to vector<36x256xf32>
    %78 = arith.subf %77, %68 : vector<36x256xf32>
    %cst_35 = arith.constant 0.000000e+00 : f32
    %79 = vector.broadcast %cst_35 : f32 to vector<36x256xf32>
    %80 = arith.maximumf %78, %79 : vector<36x256xf32>
    %81 = arith.mulf %80, %80 : vector<36x256xf32>
    %cst_36 = arith.constant 0.166666672 : f32
    %82 = vector.broadcast %cst_36 : f32 to vector<36x256xf32>
    %83 = arith.mulf %80, %82 : vector<36x256xf32>
    %84 = arith.mulf %81, %83 : vector<36x256xf32>
    %cst_37 = arith.constant 1.000000e+00 : f32
    %85 = vector.broadcast %cst_37 : f32 to vector<36x256xf32>
    %86 = arith.cmpf olt, %68, %85 : vector<36x256xf32>
    %87 = arith.select %86, %76, %84 : vector<36x256xi1>, vector<36x256xf32>
    %c3 = arith.constant 3 : index
    %c0_38 = arith.constant 0 : index
    %c0_39 = arith.constant 0 : index
    %88 = vector.load %arg2[%c3, %c0_38, %c0_39] : memref<9x4x36xf32, #tpu.memory_space<vmem>>, vector<1x4x36xf32>
    %89 = vector.shape_cast %88 : vector<1x4x36xf32> to vector<4x36xf32>
    %cst_40 = arith.constant dense<0.000000e+00> : vector<4x256xf32>
    %90 = tpu.matmul %89, %87, %cst_40 {dimension_numbers = #tpu.dot_dimension_numbers<[1], [0], [0], [1], [0, 0, 1, 1], [], []>} : vector<4x36xf32>, vector<36x256xf32>, vector<4x256xf32> -> vector<4x256xf32>
    %91 = arith.addf %65, %90 : vector<4x256xf32>
    %cst_41 = arith.constant 3.000000e+00 : f32
    %92 = vector.broadcast %cst_41 : f32 to vector<36x256xf32>
    %93 = arith.subf %13, %92 : vector<36x256xf32>
    %94 = math.absf %93 : vector<36x256xf32>
    %95 = arith.mulf %94, %94 : vector<36x256xf32>
    %cst_42 = arith.constant 5.000000e-01 : f32
    %96 = vector.broadcast %cst_42 : f32 to vector<36x256xf32>
    %97 = arith.mulf %96, %94 : vector<36x256xf32>
    %cst_43 = arith.constant 1.000000e+00 : f32
    %98 = vector.broadcast %cst_43 : f32 to vector<36x256xf32>
    %99 = arith.subf %97, %98 : vector<36x256xf32>
    %100 = arith.mulf %99, %95 : vector<36x256xf32>
    %cst_44 = arith.constant 0.666666686 : f32
    %101 = vector.broadcast %cst_44 : f32 to vector<36x256xf32>
    %102 = arith.addf %100, %101 : vector<36x256xf32>
    %cst_45 = arith.constant 2.000000e+00 : f32
    %103 = vector.broadcast %cst_45 : f32 to vector<36x256xf32>
    %104 = arith.subf %103, %94 : vector<36x256xf32>
    %cst_46 = arith.constant 0.000000e+00 : f32
    %105 = vector.broadcast %cst_46 : f32 to vector<36x256xf32>
    %106 = arith.maximumf %104, %105 : vector<36x256xf32>
    %107 = arith.mulf %106, %106 : vector<36x256xf32>
    %cst_47 = arith.constant 0.166666672 : f32
    %108 = vector.broadcast %cst_47 : f32 to vector<36x256xf32>
    %109 = arith.mulf %106, %108 : vector<36x256xf32>
    %110 = arith.mulf %107, %109 : vector<36x256xf32>
    %cst_48 = arith.constant 1.000000e+00 : f32
    %111 = vector.broadcast %cst_48 : f32 to vector<36x256xf32>
    %112 = arith.cmpf olt, %94, %111 : vector<36x256xf32>
    %113 = arith.select %112, %102, %110 : vector<36x256xi1>, vector<36x256xf32>
    %c4 = arith.constant 4 : index
    %c0_49 = arith.constant 0 : index
    %c0_50 = arith.constant 0 : index
    %114 = vector.load %arg2[%c4, %c0_49, %c0_50] : memref<9x4x36xf32, #tpu.memory_space<vmem>>, vector<1x4x36xf32>
    %115 = vector.shape_cast %114 : vector<1x4x36xf32> to vector<4x36xf32>
    %cst_51 = arith.constant dense<0.000000e+00> : vector<4x256xf32>
    %116 = tpu.matmul %115, %113, %cst_51 {dimension_numbers = #tpu.dot_dimension_numbers<[1], [0], [0], [1], [0, 0, 1, 1], [], []>} : vector<4x36xf32>, vector<36x256xf32>, vector<4x256xf32> -> vector<4x256xf32>
    %117 = arith.addf %91, %116 : vector<4x256xf32>
    %cst_52 = arith.constant 4.000000e+00 : f32
    %118 = vector.broadcast %cst_52 : f32 to vector<36x256xf32>
    %119 = arith.subf %13, %118 : vector<36x256xf32>
    %120 = math.absf %119 : vector<36x256xf32>
    %121 = arith.mulf %120, %120 : vector<36x256xf32>
    %cst_53 = arith.constant 5.000000e-01 : f32
    %122 = vector.broadcast %cst_53 : f32 to vector<36x256xf32>
    %123 = arith.mulf %122, %120 : vector<36x256xf32>
    %cst_54 = arith.constant 1.000000e+00 : f32
    %124 = vector.broadcast %cst_54 : f32 to vector<36x256xf32>
    %125 = arith.subf %123, %124 : vector<36x256xf32>
    %126 = arith.mulf %125, %121 : vector<36x256xf32>
    %cst_55 = arith.constant 0.666666686 : f32
    %127 = vector.broadcast %cst_55 : f32 to vector<36x256xf32>
    %128 = arith.addf %126, %127 : vector<36x256xf32>
    %cst_56 = arith.constant 2.000000e+00 : f32
    %129 = vector.broadcast %cst_56 : f32 to vector<36x256xf32>
    %130 = arith.subf %129, %120 : vector<36x256xf32>
    %cst_57 = arith.constant 0.000000e+00 : f32
    %131 = vector.broadcast %cst_57 : f32 to vector<36x256xf32>
    %132 = arith.maximumf %130, %131 : vector<36x256xf32>
    %133 = arith.mulf %132, %132 : vector<36x256xf32>
    %cst_58 = arith.constant 0.166666672 : f32
    %134 = vector.broadcast %cst_58 : f32 to vector<36x256xf32>
    %135 = arith.mulf %132, %134 : vector<36x256xf32>
    %136 = arith.mulf %133, %135 : vector<36x256xf32>
    %cst_59 = arith.constant 1.000000e+00 : f32
    %137 = vector.broadcast %cst_59 : f32 to vector<36x256xf32>
    %138 = arith.cmpf olt, %120, %137 : vector<36x256xf32>
    %139 = arith.select %138, %128, %136 : vector<36x256xi1>, vector<36x256xf32>
    %c5 = arith.constant 5 : index
    %c0_60 = arith.constant 0 : index
    %c0_61 = arith.constant 0 : index
    %140 = vector.load %arg2[%c5, %c0_60, %c0_61] : memref<9x4x36xf32, #tpu.memory_space<vmem>>, vector<1x4x36xf32>
    %141 = vector.shape_cast %140 : vector<1x4x36xf32> to vector<4x36xf32>
    %cst_62 = arith.constant dense<0.000000e+00> : vector<4x256xf32>
    %142 = tpu.matmul %141, %139, %cst_62 {dimension_numbers = #tpu.dot_dimension_numbers<[1], [0], [0], [1], [0, 0, 1, 1], [], []>} : vector<4x36xf32>, vector<36x256xf32>, vector<4x256xf32> -> vector<4x256xf32>
    %143 = arith.addf %117, %142 : vector<4x256xf32>
    %cst_63 = arith.constant 5.000000e+00 : f32
    %144 = vector.broadcast %cst_63 : f32 to vector<36x256xf32>
    %145 = arith.subf %13, %144 : vector<36x256xf32>
    %146 = math.absf %145 : vector<36x256xf32>
    %147 = arith.mulf %146, %146 : vector<36x256xf32>
    %cst_64 = arith.constant 5.000000e-01 : f32
    %148 = vector.broadcast %cst_64 : f32 to vector<36x256xf32>
    %149 = arith.mulf %148, %146 : vector<36x256xf32>
    %cst_65 = arith.constant 1.000000e+00 : f32
    %150 = vector.broadcast %cst_65 : f32 to vector<36x256xf32>
    %151 = arith.subf %149, %150 : vector<36x256xf32>
    %152 = arith.mulf %151, %147 : vector<36x256xf32>
    %cst_66 = arith.constant 0.666666686 : f32
    %153 = vector.broadcast %cst_66 : f32 to vector<36x256xf32>
    %154 = arith.addf %152, %153 : vector<36x256xf32>
    %cst_67 = arith.constant 2.000000e+00 : f32
    %155 = vector.broadcast %cst_67 : f32 to vector<36x256xf32>
    %156 = arith.subf %155, %146 : vector<36x256xf32>
    %cst_68 = arith.constant 0.000000e+00 : f32
    %157 = vector.broadcast %cst_68 : f32 to vector<36x256xf32>
    %158 = arith.maximumf %156, %157 : vector<36x256xf32>
    %159 = arith.mulf %158, %158 : vector<36x256xf32>
    %cst_69 = arith.constant 0.166666672 : f32
    %160 = vector.broadcast %cst_69 : f32 to vector<36x256xf32>
    %161 = arith.mulf %158, %160 : vector<36x256xf32>
    %162 = arith.mulf %159, %161 : vector<36x256xf32>
    %cst_70 = arith.constant 1.000000e+00 : f32
    %163 = vector.broadcast %cst_70 : f32 to vector<36x256xf32>
    %164 = arith.cmpf olt, %146, %163 : vector<36x256xf32>
    %165 = arith.select %164, %154, %162 : vector<36x256xi1>, vector<36x256xf32>
    %c6 = arith.constant 6 : index
    %c0_71 = arith.constant 0 : index
    %c0_72 = arith.constant 0 : index
    %166 = vector.load %arg2[%c6, %c0_71, %c0_72] : memref<9x4x36xf32, #tpu.memory_space<vmem>>, vector<1x4x36xf32>
    %167 = vector.shape_cast %166 : vector<1x4x36xf32> to vector<4x36xf32>
    %cst_73 = arith.constant dense<0.000000e+00> : vector<4x256xf32>
    %168 = tpu.matmul %167, %165, %cst_73 {dimension_numbers = #tpu.dot_dimension_numbers<[1], [0], [0], [1], [0, 0, 1, 1], [], []>} : vector<4x36xf32>, vector<36x256xf32>, vector<4x256xf32> -> vector<4x256xf32>
    %169 = arith.addf %143, %168 : vector<4x256xf32>
    %cst_74 = arith.constant 6.000000e+00 : f32
    %170 = vector.broadcast %cst_74 : f32 to vector<36x256xf32>
    %171 = arith.subf %13, %170 : vector<36x256xf32>
    %172 = math.absf %171 : vector<36x256xf32>
    %173 = arith.mulf %172, %172 : vector<36x256xf32>
    %cst_75 = arith.constant 5.000000e-01 : f32
    %174 = vector.broadcast %cst_75 : f32 to vector<36x256xf32>
    %175 = arith.mulf %174, %172 : vector<36x256xf32>
    %cst_76 = arith.constant 1.000000e+00 : f32
    %176 = vector.broadcast %cst_76 : f32 to vector<36x256xf32>
    %177 = arith.subf %175, %176 : vector<36x256xf32>
    %178 = arith.mulf %177, %173 : vector<36x256xf32>
    %cst_77 = arith.constant 0.666666686 : f32
    %179 = vector.broadcast %cst_77 : f32 to vector<36x256xf32>
    %180 = arith.addf %178, %179 : vector<36x256xf32>
    %cst_78 = arith.constant 2.000000e+00 : f32
    %181 = vector.broadcast %cst_78 : f32 to vector<36x256xf32>
    %182 = arith.subf %181, %172 : vector<36x256xf32>
    %cst_79 = arith.constant 0.000000e+00 : f32
    %183 = vector.broadcast %cst_79 : f32 to vector<36x256xf32>
    %184 = arith.maximumf %182, %183 : vector<36x256xf32>
    %185 = arith.mulf %184, %184 : vector<36x256xf32>
    %cst_80 = arith.constant 0.166666672 : f32
    %186 = vector.broadcast %cst_80 : f32 to vector<36x256xf32>
    %187 = arith.mulf %184, %186 : vector<36x256xf32>
    %188 = arith.mulf %185, %187 : vector<36x256xf32>
    %cst_81 = arith.constant 1.000000e+00 : f32
    %189 = vector.broadcast %cst_81 : f32 to vector<36x256xf32>
    %190 = arith.cmpf olt, %172, %189 : vector<36x256xf32>
    %191 = arith.select %190, %180, %188 : vector<36x256xi1>, vector<36x256xf32>
    %c7 = arith.constant 7 : index
    %c0_82 = arith.constant 0 : index
    %c0_83 = arith.constant 0 : index
    %192 = vector.load %arg2[%c7, %c0_82, %c0_83] : memref<9x4x36xf32, #tpu.memory_space<vmem>>, vector<1x4x36xf32>
    %193 = vector.shape_cast %192 : vector<1x4x36xf32> to vector<4x36xf32>
    %cst_84 = arith.constant dense<0.000000e+00> : vector<4x256xf32>
    %194 = tpu.matmul %193, %191, %cst_84 {dimension_numbers = #tpu.dot_dimension_numbers<[1], [0], [0], [1], [0, 0, 1, 1], [], []>} : vector<4x36xf32>, vector<36x256xf32>, vector<4x256xf32> -> vector<4x256xf32>
    %195 = arith.addf %169, %194 : vector<4x256xf32>
    %cst_85 = arith.constant 7.000000e+00 : f32
    %196 = vector.broadcast %cst_85 : f32 to vector<36x256xf32>
    %197 = arith.subf %13, %196 : vector<36x256xf32>
    %198 = math.absf %197 : vector<36x256xf32>
    %199 = arith.mulf %198, %198 : vector<36x256xf32>
    %cst_86 = arith.constant 5.000000e-01 : f32
    %200 = vector.broadcast %cst_86 : f32 to vector<36x256xf32>
    %201 = arith.mulf %200, %198 : vector<36x256xf32>
    %cst_87 = arith.constant 1.000000e+00 : f32
    %202 = vector.broadcast %cst_87 : f32 to vector<36x256xf32>
    %203 = arith.subf %201, %202 : vector<36x256xf32>
    %204 = arith.mulf %203, %199 : vector<36x256xf32>
    %cst_88 = arith.constant 0.666666686 : f32
    %205 = vector.broadcast %cst_88 : f32 to vector<36x256xf32>
    %206 = arith.addf %204, %205 : vector<36x256xf32>
    %cst_89 = arith.constant 2.000000e+00 : f32
    %207 = vector.broadcast %cst_89 : f32 to vector<36x256xf32>
    %208 = arith.subf %207, %198 : vector<36x256xf32>
    %cst_90 = arith.constant 0.000000e+00 : f32
    %209 = vector.broadcast %cst_90 : f32 to vector<36x256xf32>
    %210 = arith.maximumf %208, %209 : vector<36x256xf32>
    %211 = arith.mulf %210, %210 : vector<36x256xf32>
    %cst_91 = arith.constant 0.166666672 : f32
    %212 = vector.broadcast %cst_91 : f32 to vector<36x256xf32>
    %213 = arith.mulf %210, %212 : vector<36x256xf32>
    %214 = arith.mulf %211, %213 : vector<36x256xf32>
    %cst_92 = arith.constant 1.000000e+00 : f32
    %215 = vector.broadcast %cst_92 : f32 to vector<36x256xf32>
    %216 = arith.cmpf olt, %198, %215 : vector<36x256xf32>
    %217 = arith.select %216, %206, %214 : vector<36x256xi1>, vector<36x256xf32>
    %c8 = arith.constant 8 : index
    %c0_93 = arith.constant 0 : index
    %c0_94 = arith.constant 0 : index
    %218 = vector.load %arg2[%c8, %c0_93, %c0_94] : memref<9x4x36xf32, #tpu.memory_space<vmem>>, vector<1x4x36xf32>
    %219 = vector.shape_cast %218 : vector<1x4x36xf32> to vector<4x36xf32>
    %cst_95 = arith.constant dense<0.000000e+00> : vector<4x256xf32>
    %220 = tpu.matmul %219, %217, %cst_95 {dimension_numbers = #tpu.dot_dimension_numbers<[1], [0], [0], [1], [0, 0, 1, 1], [], []>} : vector<4x36xf32>, vector<36x256xf32>, vector<4x256xf32> -> vector<4x256xf32>
    %221 = arith.addf %195, %220 : vector<4x256xf32>
    %c0_96 = arith.constant 0 : index
    %c0_97 = arith.constant 0 : index
    %222 = vector.load %arg3[%c0_96, %c0_97] : memref<4x1xf32, #tpu.memory_space<vmem>>, vector<4x1xf32>
    %223 = vector.broadcast %222 : vector<4x1xf32> to vector<4x256xf32>
    %224 = arith.addf %221, %223 : vector<4x256xf32>
    %c0_98 = arith.constant 0 : index
    %c0_99 = arith.constant 0 : index
    %225 = vector.load %arg4[%c0_98, %c0_99] : memref<4x256xf32, #tpu.memory_space<vmem>>, vector<4x256xf32>
    tpu.vector_store %arg4[%c0_98, %c0_99], %224 {strides = array<i32>} : memref<4x256xf32, #tpu.memory_space<vmem>>, vector<4x256xf32>,
    return
  }
  func.func @transform_0(%arg0: i32) -> (i32, i32) {
    %c0_i32 = arith.constant 0 : i32
    %c0_i32_0 = arith.constant 0 : i32
    return %c0_i32, %arg0 : i32, i32
  }
  func.func @transform_1(%arg0: i32) -> (i32, i32, i32) {
    %c0_i32 = arith.constant 0 : i32
    %c0_i32_0 = arith.constant 0 : i32
    %c0_i32_1 = arith.constant 0 : i32
    %c0_i32_2 = arith.constant 0 : i32
    return %c0_i32, %c0_i32_0, %c0_i32_1 : i32, i32, i32
  }
  func.func @transform_2(%arg0: i32) -> (i32, i32) {
    %c0_i32 = arith.constant 0 : i32
    %c0_i32_0 = arith.constant 0 : i32
    %c0_i32_1 = arith.constant 0 : i32
    return %c0_i32, %c0_i32_0 : i32, i32
  }
  func.func @transform_3(%arg0: i32) -> (i32, i32) {
    %c0_i32 = arith.constant 0 : i32
    %c0_i32_0 = arith.constant 0 : i32
    return %c0_i32, %arg0 : i32, i32
  }
}

</mosaic_0001>

<llo_original>
// kernel: tpu_custom_call.1
$region0: #{tpu_custom_call.1}
  #allocation0 [shape = 'u32[]', space=smem, size = 0x4, offset = 0x4, fixed_abs, tag = 'smem constant byte address 0x4 - core index']
  #allocation1 [shape = 'u32[144,128]{1,0:T(1,128)}', space=vmem, size = 0x12000, scoped, tag = 'internal scratch']
  %s0 = inlined_call_operand.hbm [shape: f32[36,512], index: 0, kind: input, shape index: {}]
  %s1 = inlined_call_operand.hbm [shape: f32[9,4,36], index: 1, kind: input, shape index: {}]
  %s2 = inlined_call_operand.vmem [shape: f32[4,1], index: 2, kind: input, shape index: {}]
  %s3 = inlined_call_operand.hbm [shape: f32[4,512], index: 3, kind: output, shape index: {}]
  %s4 = sld [smem:[#allocation0]]
  $region53: #{tpu_custom_call.1} parent=0
    _
  %s6 = ssub.s32 1, %s4
  %s7 = scalar_select 0, %s6, %s4
  $region1: #{tpu_custom_call.1} parent=0
    #allocation2 [shape = 'u8[81920]{0}', space=vmem, size = 0x14000, scoped, tag = 'input window, operand 0']
    #allocation3 [shape = 's32[2]{0}', space=sflag, size = 0x8, scoped, tag = 'scoped memory for tpu_custom_call.1']
    #allocation4 [shape = 's32[2]{0}', space=sflag, size = 0x8, scoped, tag = 'scoped memory for tpu_custom_call.1']
    #allocation5 [shape = 'u8[18432]{0}', space=vmem, size = 0x4800, scoped, tag = 'input window, operand 1, single buffered']
    #allocation6 [shape = 's32[1]{0}', space=sflag, size = 0x4, scoped, tag = 'scoped memory for tpu_custom_call.1']
    #allocation7 [shape = 'u8[8192]{0}', space=vmem, size = 0x2000, scoped, tag = 'output window, operand 0']
    %8 = vsyncpa [#allocation3], 0
    %s9 = scalar_lea.sflag [#allocation3], 1
    %10 = vsyncpa %s9, 0
    %11 = vsyncpa [#allocation6], 0
    %12 = vsyncpa [#allocation4], 0
    %s13 = scalar_lea.sflag [#allocation4], 1
    %14 = vsyncpa %s13, 0
    loop: start=0, step=1, limit=4
    $region2: #{tpu_custom_call.1} parent=1 // loop_pre_header
      _
    $region3: #{tpu_custom_call.1} parent=1 // loop_header
      %s16 = sphi 0, %s20
      %p17 = scmp.ge.s32.totalorder %s16, 4
      %s26 = sphi 0, %s28
      %s29 = sphi 0, %s26
      %s30 = sphi 0, %s29
      %s46 = sphi 0, %s30
      %s50 = sphi 0, %s50
      %s52 = sphi 0, %s50
      %s53 = sphi 0, %s52
      %s67 = sphi 0, %s53
      %s71 = sphi 0, %s71
      %s73 = sphi 0, %s71
      %s74 = sphi 0, %s73
      %s88 = sphi 0, %s74
      %s94 = sphi 0, %s96
      %s97 = sphi 0, %s94
      %s98 = sphi 0, %s97
      %s114 = sphi 0, %s98
    $region4: #{tpu_custom_call.1} parent=1 // loop_header_branch
      %19 = sbr.rel (%p17) target = $region8
    $region5: #{tpu_custom_call.1} parent=1 // loop_body
      %s21 = ssub.s32 %s16, 1
      %s22 = ssub.s32 %s16, 2
      %s23 = sadd.s32 %s16, 1
      %s24 = ssub.s32 %s16, %s23
      %p25 = scmp.eq.s32.totalorder %s24, 0
      %s27 = sadd.s32 %s26, 1
      %s28 = scalar_select %p25, %s26, %s27
      %p31 = pneg %p25
      %p32 = scmp.eq.s32.totalorder %s16, 1
      %p33 = por %p31, %p32
      %p34 = scmp.ne.s32.totalorder %s26, %s29
      %p35 = scmp.eq.s32.totalorder %s16, 0
      %p36 = por %p34, %p35
      %p37 = scmp.ne.s32.totalorder %s26, %s29
      %p38 = scmp.eq.s32.totalorder %s21, 1
      %p39 = por %p37, %p38
      %p40 = scmp.ne.s32.totalorder %s29, %s30
      %p41 = scmp.eq.s32.totalorder %s21, 0
      %p42 = por %p40, %p41
      %p43 = scmp.ne.s32.totalorder %s29, %s30
      %p44 = scmp.eq.s32.totalorder %s22, 1
      %p45 = por %p43, %p44
      %p47 = scmp.ne.s32.totalorder %s30, %s46
      %p48 = scmp.eq.s32.totalorder %s22, 0
      %p49 = por %p47, %p48
      %s51 = sadd.s32 %s50, 1
      %p54 = scmp.eq.s32.totalorder %s16, 1
      %p55 = scmp.ne.s32.totalorder %s50, %s52
      %p56 = scmp.eq.s32.totalorder %s16, 0
      %p57 = por %p55, %p56
      %p58 = scmp.ne.s32.totalorder %s50, %s52
      %p59 = scmp.eq.s32.totalorder %s21, 1
      %p60 = por %p58, %p59
      %p61 = scmp.ne.s32.totalorder %s52, %s53
      %p62 = scmp.eq.s32.totalorder %s21, 0
      %p63 = por %p61, %p62
      %p64 = scmp.ne.s32.totalorder %s52, %s53
      %p65 = scmp.eq.s32.totalorder %s22, 1
      %p66 = por %p64, %p65
      %p68 = scmp.ne.s32.totalorder %s53, %s67
      %p69 = scmp.eq.s32.totalorder %s22, 0
      %p70 = por %p68, %p69
      %s72 = sadd.s32 %s71, 1
      %p75 = scmp.eq.s32.totalorder %s16, 1
      %p76 = scmp.ne.s32.totalorder %s71, %s73
      %p77 = scmp.eq.s32.totalorder %s16, 0
      %p78 = por %p76, %p77
      %p79 = scmp.ne.s32.totalorder %s71, %s73
      %p80 = scmp.eq.s32.totalorder %s21, 1
      %p81 = por %p79, %p80
      %p82 = scmp.ne.s32.totalorder %s73, %s74
      %p83 = scmp.eq.s32.totalorder %s21, 0
      %p84 = por %p82, %p83
      %p85 = scmp.ne.s32.totalorder %s73, %s74
      %p86 = scmp.eq.s32.totalorder %s22, 1
      %p87 = por %p85, %p86
      %p89 = scmp.ne.s32.totalorder %s74, %s88
      %p90 = scmp.eq.s32.totalorder %s22, 0
      %p91 = por %p89, %p90
      %s92 = ssub.s32 %s16, %s23
      %p93 = scmp.eq.s32.totalorder %s92, 0
      %s95 = sadd.s32 %s94, 1
      %s96 = scalar_select %p93, %s94, %s95
      %p99 = pneg %p93
      %p100 = scmp.eq.s32.totalorder %s16, 1
      %p101 = por %p99, %p100
      %p102 = scmp.ne.s32.totalorder %s94, %s97
      %p103 = scmp.eq.s32.totalorder %s16, 0
      %p104 = por %p102, %p103
      %p105 = scmp.ne.s32.totalorder %s94, %s97
      %p106 = scmp.eq.s32.totalorder %s21, 1
      %p107 = por %p105, %p106
      %p108 = scmp.ne.s32.totalorder %s97, %s98
      %p109 = scmp.eq.s32.totalorder %s21, 0
      %p110 = por %p108, %p109
      %p111 = scmp.ne.s32.totalorder %s97, %s98
      %p112 = scmp.eq.s32.totalorder %s22, 1
      %p113 = por %p111, %p112
      %p115 = scmp.ne.s32.totalorder %s98, %s114
      %p116 = scmp.eq.s32.totalorder %s22, 0
      %p117 = por %p115, %p116
      %p118 = scmp.le.s32.totalorder 1, %s16
      %p119 = scmp.lt.s32.totalorder %s16, 3
      %p120 = pnand %p118, %p119
      %p121 = pneg %p120
      // Predicated region
      $region9: #{tpu_custom_call.1} parent=5 // pred_check
        _
      $region10: #{tpu_custom_call.1} parent=5 // pred_check_branch
        %123 = sbr.rel (%p120) target = $region12
      $region11: #{tpu_custom_call.1} parent=5 // pred_region
        %s124 = ssub.s32 %s16, 1
        // Predicated region
        $region13: #{tpu_custom_call.1} parent=11 // pred_check
          %p125 = pneg %p63
        $region14: #{tpu_custom_call.1} parent=11 // pred_check_branch
          %127 = sbr.rel (%p125) target = $region16
        $region15: #{tpu_custom_call.1} parent=11 // pred_region
          %s129 = ssub.s32 576, 576
          %130 = vsyncadd [#allocation6], %s129
          %s131 = sshll.u32 [#allocation5], 4
          %s132 = int_to_ptr.vmem [resolvable:$true] %s131
          %137 = dma.hbm_to_vmem [thread:$0]  %s1, 576, %s132, [#allocation6], 64, 64, 4
        $region16: #{tpu_custom_call.1} parent=11 // pred_fallthru
          _
        // Predicated region
        $region17: #{tpu_custom_call.1} parent=11 // pred_check
          %p138 = pneg %p84
        $region18: #{tpu_custom_call.1} parent=11 // pred_check_branch
          %140 = sbr.rel (%p138) target = $region20
        $region19: #{tpu_custom_call.1} parent=11 // pred_region
          _
        $region20: #{tpu_custom_call.1} parent=11 // pred_fallthru
          _
      $region12: #{tpu_custom_call.1} parent=5 // pred_fallthru
        _
      %p141 = scmp.lt.s32.totalorder %s16, 2
      // Predicated region
      $region21: #{tpu_custom_call.1} parent=5 // pred_check
        %p142 = pneg %p141
      $region22: #{tpu_custom_call.1} parent=5 // pred_check_branch
        %144 = sbr.rel (%p142) target = $region24
      $region23: #{tpu_custom_call.1} parent=5 // pred_region
        // Predicated region
        $region25: #{tpu_custom_call.1} parent=23 // pred_check
          %p145 = pneg %p36
        $region26: #{tpu_custom_call.1} parent=23 // pred_check_branch
          %147 = sbr.rel (%p145) target = $region28
        $region27: #{tpu_custom_call.1} parent=23 // pred_region
          %s148 = sand.u32 %s26, 1
          %s149 = scalar_lea.sflag [#allocation3], %s148
          %s150 = sand.u32 %s26, 1
          %s151 = smul.addr %s150, 80
          %s152 = scalar_lea.vmem [#allocation2], %s151
          %s153 = smul.u32 2, %s16
          %s155 = ssub.s32 1280, 1280
          %156 = vsyncadd %s149, %s155
          %s157 = smul.addr %s153, 128
          %s158 = scalar_lea.hbm %s0, %s157
          %s159 = sshll.u32 %s152, 4
          %s160 = int_to_ptr.vmem [resolvable:$true] %s159
          %165 = dma.hbm_to_vmem [thread:$0]  %s158, 1280, %s160, %s149, 512, 256, 16
        $region28: #{tpu_custom_call.1} parent=23 // pred_fallthru
          _
      $region24: #{tpu_custom_call.1} parent=5 // pred_fallthru
        _
      %p166 = scmp.le.s32.totalorder 1, %s16
      %p167 = scmp.lt.s32.totalorder %s16, 3
      %p168 = pnand %p166, %p167
      %p169 = pneg %p168
      // Predicated region
      $region29: #{tpu_custom_call.1} parent=5 // pred_check
        _
      $region30: #{tpu_custom_call.1} parent=5 // pred_check_branch
        %171 = sbr.rel (%p168) target = $region32
      $region31: #{tpu_custom_call.1} parent=5 // pred_region
        %s172 = ssub.s32 %s16, 1
        %s173 = sand.u32 %s29, 1
        %s174 = scalar_lea.sflag [#allocation3], %s173
        %s175 = sand.u32 %s29, 1
        %s176 = smul.addr %s175, 80
        %s177 = scalar_lea.vmem [#allocation2], %s176
        // Predicated region
        $region33: #{tpu_custom_call.1} parent=31 // pred_check
          %p178 = pneg %p42
        $region34: #{tpu_custom_call.1} parent=31 // pred_check_branch
          %180 = sbr.rel (%p178) target = $region36
        $region35: #{tpu_custom_call.1} parent=31 // pred_region
          %181 = dma.done %s174, 1280
        $region36: #{tpu_custom_call.1} parent=31 // pred_fallthru
          _
        // Predicated region
        $region37: #{tpu_custom_call.1} parent=31 // pred_check
          %p182 = pneg %p63
        $region38: #{tpu_custom_call.1} parent=31 // pred_check_branch
          %184 = sbr.rel (%p182) target = $region40
        $region39: #{tpu_custom_call.1} parent=31 // pred_region
          %185 = dma.done [#allocation6], 576
        $region40: #{tpu_custom_call.1} parent=31 // pred_fallthru
          _
        %s186 = sand.u32 %s29, 1
        %s187 = scalar_lea.sflag [#allocation3], %s186
        %s188 = sand.u32 %s29, 1
        %s189 = smul.addr %s188, 80
        %s190 = scalar_lea.vmem [#allocation2], %s189
        %p191 = pneg %p42
        %p192 = pneg %p39
        %p193 = pneg %p63
        %p194 = pneg %p60
        %p195 = pneg %p84
        %p196 = pneg %p81
        %p197 = pneg %p110
        %p198 = pneg %p107
        %s199 = sand.u32 %s97, 1
        %s200 = scalar_lea.sflag [#allocation4], %s199
        %s201 = sand.u32 %s97, 1
        %s202 = smul.addr %s201, 8
        %s203 = scalar_lea.vmem [#allocation7], %s202
        %s204 = smul.u32 2, %s21
        %s205 = smul.u32 2, %s21
        %v206 = vld [vmem:[%s177] sm:$0xff]
        %v207 = vld [vmem:[%s177 + $0x8] sm:$0xff]
        %v208 = vld [vmem:[%s177 + $0x10] sm:$0xff]
        %v209 = vld [vmem:[%s177 + $0x18] sm:$0xff]
        %v210 = vld [vmem:[%s177 + $0x20] sm:$0xff]
        %v211 = vld [vmem:[%s177 + $0x28] sm:$0xff]
        %v212 = vld [vmem:[%s177 + $0x30] sm:$0xff]
        %v213 = vld [vmem:[%s177 + $0x38] sm:$0xff]
        %v214 = vld [vmem:[%s177 + $0x40] sm:$0xf]
        %v215 = vld [vmem:[%s177 + $0x48] sm:$0xf]
        %v216 = vsub.f32 0.0, %v206
        %v217 = vsub.f32 0.0, %v207
        %v218 = vsub.f32 0.0, %v208
        %v219 = vsub.f32 0.0, %v209
        %v220 = vsub.f32 0.0, %v210
        %v221 = vsub.f32 0.0, %v211
        %v222 = vsub.f32 0.0, %v212
        %v223 = vsub.f32 0.0, %v213
        %v224 = vsub.f32 0.0, %v214
        %v225 = vsub.f32 0.0, %v215
        %v226 = vmul.f32 %v216, 1.442695
        %v227 = vpow.pop %v226
        %v228 = vmul.f32 %v217, 1.442695
        %v229 = vpow.pop %v228
        %v230 = vmul.f32 %v218, 1.442695
        %v231 = vpow.pop %v230
        %v232 = vmul.f32 %v219, 1.442695
        %v233 = vpow.pop %v232
        %v234 = vmul.f32 %v220, 1.442695
        %v235 = vpow.pop %v234
        %v236 = vmul.f32 %v221, 1.442695
        %v237 = vpow.pop %v236
        %v238 = vmul.f32 %v222, 1.442695
        %v239 = vpow.pop %v238
        %v240 = vmul.f32 %v223, 1.442695
        %v241 = vpow.pop %v240
        %v242 = vmul.f32 %v224, 1.442695
        %v243 = vpow.pop %v242
        %v244 = vmul.f32 %v225, 1.442695
        %v245 = vpow.pop %v244
        %v246 = vadd.f32 %v227, 1.0
        %v247 = vadd.f32 %v229, 1.0
        %v248 = vadd.f32 %v231, 1.0
        %v249 = vadd.f32 %v233, 1.0
        %v250 = vadd.f32 %v235, 1.0
        %v251 = vadd.f32 %v237, 1.0
        %v252 = vadd.f32 %v239, 1.0
        %v253 = vadd.f32 %v241, 1.0
        %v254 = vadd.f32 %v243, 1.0
        %v255 = vadd.f32 %v245, 1.0
        %v256 = vrcp.pop %v246
        %v257 = vmul.f32 %v206, %v256
        %v258 = vrcp.pop %v247
        %v259 = vmul.f32 %v207, %v258
        %v260 = vrcp.pop %v248
        %v261 = vmul.f32 %v208, %v260
        %v262 = vrcp.pop %v249
        %v263 = vmul.f32 %v209, %v262
        %v264 = vrcp.pop %v250
        %v265 = vmul.f32 %v210, %v264
        %v266 = vrcp.pop %v251
        %v267 = vmul.f32 %v211, %v266
        %v268 = vrcp.pop %v252
        %v269 = vmul.f32 %v212, %v268
        %v270 = vrcp.pop %v253
        %v271 = vmul.f32 %v213, %v270
        %v272 = vrcp.pop %v254
        %v273 = vmul.f32 %v214, %v272
        %v274 = vrcp.pop %v255
        %v275 = vmul.f32 %v215, %v274
        %v276 = vld [vmem:[#allocation5] sm:$0xf]
        %v277 = vsub.f32 %v206, -1.4
        %v278 = vsub.f32 %v207, -1.4
        %v279 = vsub.f32 %v208, -1.4
        %v280 = vsub.f32 %v209, -1.4
        %v281 = vsub.f32 %v210, -1.4
        %v282 = vsub.f32 %v211, -1.4
        %v283 = vsub.f32 %v212, -1.4
        %v284 = vsub.f32 %v213, -1.4
        %v285 = vsub.f32 %v214, -1.4
        %v286 = vsub.f32 %v215, -1.4
        %v287 = vmul.f32 %v277, 2.5
        %v288 = vmul.f32 %v278, 2.5
        %v289 = vmul.f32 %v279, 2.5
        %v290 = vmul.f32 %v280, 2.5
        %v291 = vmul.f32 %v281, 2.5
        %v292 = vmul.f32 %v282, 2.5
        %v293 = vmul.f32 %v283, 2.5
        %v294 = vmul.f32 %v284, 2.5
        %v295 = vmul.f32 %v285, 2.5
        %v296 = vmul.f32 %v286, 2.5
        %v297 = vand.u32 2147483647, %v287
        %v298 = vand.u32 2147483647, %v288
        %v299 = vand.u32 2147483647, %v289
        %v300 = vand.u32 2147483647, %v290
        %v301 = vand.u32 2147483647, %v291
        %v302 = vand.u32 2147483647, %v292
        %v303 = vand.u32 2147483647, %v293
        %v304 = vand.u32 2147483647, %v294
        %v305 = vand.u32 2147483647, %v295
        %v306 = vand.u32 2147483647, %v296
        %v307 = vmul.f32 %v297, %v297
        %v308 = vmul.f32 %v298, %v298
        %v309 = vmul.f32 %v299, %v299
        %v310 = vmul.f32 %v300, %v300
        %v311 = vmul.f32 %v301, %v301
        %v312 = vmul.f32 %v302, %v302
        %v313 = vmul.f32 %v303, %v303
        %v314 = vmul.f32 %v304, %v304
        %v315 = vmul.f32 %v305, %v305
        %v316 = vmul.f32 %v306, %v306
        %v317 = vmul.f32 %v297, 0.5
        %v318 = vmul.f32 %v298, 0.5
        %v319 = vmul.f32 %v299, 0.5
        %v320 = vmul.f32 %v300, 0.5
        %v321 = vmul.f32 %v301, 0.5
        %v322 = vmul.f32 %v302, 0.5
        %v323 = vmul.f32 %v303, 0.5
        %v324 = vmul.f32 %v304, 0.5
        %v325 = vmul.f32 %v305, 0.5
        %v326 = vmul.f32 %v306, 0.5
        %v327 = vsub.f32 %v317, 1.0
        %v328 = vsub.f32 %v318, 1.0
        %v329 = vsub.f32 %v319, 1.0
        %v330 = vsub.f32 %v320, 1.0
        %v331 = vsub.f32 %v321, 1.0
        %v332 = vsub.f32 %v322, 1.0
        %v333 = vsub.f32 %v323, 1.0
        %v334 = vsub.f32 %v324, 1.0
        %v335 = vsub.f32 %v325, 1.0
        %v336 = vsub.f32 %v326, 1.0
        %v337 = vmul.f32 %v327, %v307
        %v338 = vmul.f32 %v328, %v308
        %v339 = vmul.f32 %v329, %v309
        %v340 = vmul.f32 %v330, %v310
        %v341 = vmul.f32 %v331, %v311
        %v342 = vmul.f32 %v332, %v312
        %v343 = vmul.f32 %v333, %v313
        %v344 = vmul.f32 %v334, %v314
        %v345 = vmul.f32 %v335, %v315
        %v346 = vmul.f32 %v336, %v316
        %v347 = vadd.f32 %v337, 0.6666667
        %v348 = vadd.f32 %v338, 0.6666667
        %v349 = vadd.f32 %v339, 0.6666667
        %v350 = vadd.f32 %v340, 0.6666667
        %v351 = vadd.f32 %v341, 0.6666667
        %v352 = vadd.f32 %v342, 0.6666667
        %v353 = vadd.f32 %v343, 0.6666667
        %v354 = vadd.f32 %v344, 0.6666667
        %v355 = vadd.f32 %v345, 0.6666667
        %v356 = vadd.f32 %v346, 0.6666667
        %v357 = vsub.f32 2.0, %v297
        %v358 = vsub.f32 2.0, %v298
        %v359 = vsub.f32 2.0, %v299
        %v360 = vsub.f32 2.0, %v300
        %v361 = vsub.f32 2.0, %v301
        %v362 = vsub.f32 2.0, %v302
        %v363 = vsub.f32 2.0, %v303
        %v364 = vsub.f32 2.0, %v304
        %v365 = vsub.f32 2.0, %v305
        %v366 = vsub.f32 2.0, %v306
        %v367 = vmax.f32 %v357, 0.0
        %v368 = vmax.f32 %v358, 0.0
        %v369 = vmax.f32 %v359, 0.0
        %v370 = vmax.f32 %v360, 0.0
        %v371 = vmax.f32 %v361, 0.0
        %v372 = vmax.f32 %v362, 0.0
        %v373 = vmax.f32 %v363, 0.0
        %v374 = vmax.f32 %v364, 0.0
        %v375 = vmax.f32 %v365, 0.0
        %v376 = vmax.f32 %v366, 0.0
        %v377 = vmul.f32 %v367, %v367
        %v378 = vmul.f32 %v368, %v368
        %v379 = vmul.f32 %v369, %v369
        %v380 = vmul.f32 %v370, %v370
        %v381 = vmul.f32 %v371, %v371
        %v382 = vmul.f32 %v372, %v372
        %v383 = vmul.f32 %v373, %v373
        %v384 = vmul.f32 %v374, %v374
        %v385 = vmul.f32 %v375, %v375
        %v386 = vmul.f32 %v376, %v376
        %v387 = vmul.f32 %v367, 0.16666667
        %v388 = vmul.f32 %v368, 0.16666667
        %v389 = vmul.f32 %v369, 0.16666667
        %v390 = vmul.f32 %v370, 0.16666667
        %v391 = vmul.f32 %v371, 0.16666667
        %v392 = vmul.f32 %v372, 0.16666667
        %v393 = vmul.f32 %v373, 0.16666667
        %v394 = vmul.f32 %v374, 0.16666667
        %v395 = vmul.f32 %v375, 0.16666667
        %v396 = vmul.f32 %v376, 0.16666667
        %v397 = vmul.f32 %v377, %v387
        %v398 = vmul.f32 %v378, %v388
        %v399 = vmul.f32 %v379, %v389
        %v400 = vmul.f32 %v380, %v390
        %v401 = vmul.f32 %v381, %v391
        %v402 = vmul.f32 %v382, %v392
        %v403 = vmul.f32 %v383, %v393
        %v404 = vmul.f32 %v384, %v394
        %v405 = vmul.f32 %v385, %v395
        %v406 = vmul.f32 %v386, %v396
        %vm407 = vcmp.lt.f32.partialorder %v297, 1.0
        %vm408 = vcmp.lt.f32.partialorder %v298, 1.0
        %vm409 = vcmp.lt.f32.partialorder %v299, 1.0
        %vm410 = vcmp.lt.f32.partialorder %v300, 1.0
        %vm411 = vcmp.lt.f32.partialorder %v301, 1.0
        %vm412 = vcmp.lt.f32.partialorder %v302, 1.0
        %vm413 = vcmp.lt.f32.partialorder %v303, 1.0
        %vm414 = vcmp.lt.f32.partialorder %v304, 1.0
        %vm415 = vcmp.lt.f32.partialorder %v305, 1.0
        %vm416 = vcmp.lt.f32.partialorder %v306, 1.0
        %v417 = vsel %vm407, %v347, %v397
        %v418 = vsel %vm408, %v348, %v398
        %v419 = vsel %vm409, %v349, %v399
        %v420 = vsel %vm410, %v350, %v400
        %v421 = vsel %vm411, %v351, %v401
        %v422 = vsel %vm412, %v352, %v402
        %v423 = vsel %vm413, %v353, %v403
        %v424 = vsel %vm414, %v354, %v404
        %v425 = vsel %vm415, %v355, %v405
        %v426 = vsel %vm416, %v356, %v406
        %s427 = scalar_lea.vmem [#allocation5], 4
        %v428 = vld [vmem:[%s427] sm:$0xf]
        %vm429 = vcmask 293888
        %v431 = vsel %vm429, %v428, 0
        %vm433 = vcmask 1043456
        %v435 = vsel %vm433, %v425, 0
        %v438 = vsel %vm433, %v426, 0
        %440 = vmatprep.subr.mxu0 %v418
        %441 = vmatpush1.msra.mxu0 %v417
        %442 = vmatprep.subr.mxu0 %v420
        %443 = vmatpush1.msra.mxu0 %v419
        %444 = vmatprep.subr.mxu0 %v422
        %445 = vmatpush1.msra.mxu0 %v421
        %446 = vmatprep.subr.mxu0 %v424
        %447 = vmatpush1.msra.mxu0 %v423
        %448 = vmatprep.subr.mxu0 %v438
        %449 = vmatpush1.msra.mxu0 %v435
        %450 = vmatprep.subr.mxu0 0.0
        %451 = vmatpush1.msra.mxu0 0.0
        %452 = vmatprep.subr.mxu0 0.0
        %453 = vmatpush1.msra.mxu0 0.0
        %454 = vmatprep.subr.mxu0 0.0
        %455 = vmatpush1.msra.mxu0 0.0
        %456 = vmatprep.subr.mxu0 0.0
        %457 = vmatpush1.msra.mxu0 0.0
        %458 = vmatprep.subr.mxu0 0.0
        %459 = vmatpush1.msra.mxu0 0.0
        %460 = vmatprep.subr.mxu0 0.0
        %461 = vmatpush1.msra.mxu0 0.0
        %462 = vmatprep.subr.mxu0 0.0
        %463 = vmatpush1.msra.mxu0 0.0
        %464 = vmatprep.subr.mxu0 0.0
        %465 = vmatpush1.msra.mxu0 0.0
        %466 = vmatprep.subr.mxu0 0.0
        %467 = vmatpush1.msra.mxu0 0.0
        %468 = vmatprep.subr.mxu0 0.0
        %469 = vmatpush1.msra.mxu0 0.0
        %470 = vmatprep.subr.mxu0 0.0
        %471 = vmatpush1.msra.mxu0 0.0
        %472 = vmatprep.subr.mxu0 0.0
        %473 = vmatpush1.msra.mxu0 0.0
        %474 = vmatprep.subr.mxu0 0.0
        %475 = vmatpush1.msra.mxu0 0.0
        %476 = vmatprep.subr.mxu0 0.0
        %477 = vmatpush1.msra.mxu0 0.0
        %478 = vmatprep.subr.mxu0 0.0
        %479 = vmatpush1.msra.mxu0 0.0
        %480 = vmatprep.subr.mxu0 0.0
        %481 = vmatpush1.msra.mxu0 0.0
        %482 = vmatprep.subr.mxu0 0.0
        %483 = vmatpush1.msra.mxu0 0.0
        %484 = vmatprep.subr.mxu0 0.0
        %485 = vmatpush1.msra.mxu0 0.0
        %486 = vmatprep.subr.mxu0 0.0
        %487 = vmatpush1.msra.mxu0 0.0
        %488 = vmatprep.subr.mxu0 0.0
        %489 = vmatpush1.msra.mxu0 0.0
        %490 = vmatprep.subr.mxu0 0.0
        %491 = vmatpush1.msra.mxu0 0.0
        %492 = vmatprep.subr.mxu0 0.0
        %493 = vmatpush1.msra.mxu0 0.0
        %494 = vmatprep.subr.mxu0 0.0
        %495 = vmatpush1.msra.mxu0 0.0
        %496 = vmatprep.subr.mxu0 0.0
        %497 = vmatpush1.msra.mxu0 0.0
        %498 = vmatprep.subr.mxu0 0.0
        %499 = vmatpush1.msra.mxu0 0.0
        %500 = vmatprep.subr.mxu0 0.0
        %501 = vmatpush1.msra.mxu0 0.0
        %502 = vmatprep.subr.mxu0 0.0
        %503 = vmatpush1.msra.mxu0 0.0
        %504 = vmatprep.mubr.f32.mxu0 0.0
        %505 = vmatmul.mubr.f32.gmra.mrb[0].mxu0 %v431
        %v506 = vpop.f32.mrb[0].mxu0
        %v507 = vadd.f32 0.0, %v506
        %v508 = vpop.f32.mrb[0].mxu0
        %v509 = vadd.f32 0.0, %v508
        %510 = vdwg.mxu0
        %v512 = vsel %vm429, %v276, 0
        %v515 = vsel %vm433, %v273, 0
        %v518 = vsel %vm433, %v275, 0
        %520 = vmatprep.subr.mxu0 %v259
        %521 = vmatpush1.msra.mxu0 %v257
        %522 = vmatprep.subr.mxu0 %v263
        %523 = vmatpush1.msra.mxu0 %v261
        %524 = vmatprep.subr.mxu0 %v267
        %525 = vmatpush1.msra.mxu0 %v265
        %526 = vmatprep.subr.mxu0 %v271
        %527 = vmatpush1.msra.mxu0 %v269
        %528 = vmatprep.subr.mxu0 %v518
        %529 = vmatpush1.msra.mxu0 %v515
        %530 = vmatprep.subr.mxu0 0.0
        %531 = vmatpush1.msra.mxu0 0.0
        %532 = vmatprep.subr.mxu0 0.0
        %533 = vmatpush1.msra.mxu0 0.0
        %534 = vmatprep.subr.mxu0 0.0
        %535 = vmatpush1.msra.mxu0 0.0
        %536 = vmatprep.subr.mxu0 0.0
        %537 = vmatpush1.msra.mxu0 0.0
        %538 = vmatprep.subr.mxu0 0.0
        %539 = vmatpush1.msra.mxu0 0.0
        %540 = vmatprep.subr.mxu0 0.0
        %541 = vmatpush1.msra.mxu0 0.0
        %542 = vmatprep.subr.mxu0 0.0
        %543 = vmatpush1.msra.mxu0 0.0
        %544 = vmatprep.subr.mxu0 0.0
        %545 = vmatpush1.msra.mxu0 0.0
        %546 = vmatprep.subr.mxu0 0.0
        %547 = vmatpush1.msra.mxu0 0.0
        %548 = vmatprep.subr.mxu0 0.0
        %549 = vmatpush1.msra.mxu0 0.0
        %550 = vmatprep.subr.mxu0 0.0
        %551 = vmatpush1.msra.mxu0 0.0
        %552 = vmatprep.subr.mxu0 0.0
        %553 = vmatpush1.msra.mxu0 0.0
        %554 = vmatprep.subr.mxu0 0.0
        %555 = vmatpush1.msra.mxu0 0.0
        %556 = vmatprep.subr.mxu0 0.0
        %557 = vmatpush1.msra.mxu0 0.0
        %558 = vmatprep.subr.mxu0 0.0
        %559 = vmatpush1.msra.mxu0 0.0
        %560 = vmatprep.subr.mxu0 0.0
        %561 = vmatpush1.msra.mxu0 0.0
        %562 = vmatprep.subr.mxu0 0.0
        %563 = vmatpush1.msra.mxu0 0.0
        %564 = vmatprep.subr.mxu0 0.0
        %565 = vmatpush1.msra.mxu0 0.0
        %566 = vmatprep.subr.mxu0 0.0
        %567 = vmatpush1.msra.mxu0 0.0
        %568 = vmatprep.subr.mxu0 0.0
        %569 = vmatpush1.msra.mxu0 0.0
        %570 = vmatprep.subr.mxu0 0.0
        %571 = vmatpush1.msra.mxu0 0.0
        %572 = vmatprep.subr.mxu0 0.0
        %573 = vmatpush1.msra.mxu0 0.0
        %574 = vmatprep.subr.mxu0 0.0
        %575 = vmatpush1.msra.mxu0 0.0
        %576 = vmatprep.subr.mxu0 0.0
        %577 = vmatpush1.msra.mxu0 0.0
        %578 = vmatprep.subr.mxu0 0.0
        %579 = vmatpush1.msra.mxu0 0.0
        %580 = vmatprep.subr.mxu0 0.0
        %581 = vmatpush1.msra.mxu0 0.0
        %582 = vmatprep.subr.mxu0 0.0
        %583 = vmatpush1.msra.mxu0 0.0
        %584 = vmatprep.mubr.f32.mxu0 0.0
        %585 = vmatmul.mubr.f32.gmra.mrb[0].mxu0 %v512
        %v586 = vpop.f32.mrb[0].mxu0
        %v587 = vadd.f32 %v507, %v586
        %v588 = vpop.f32.mrb[0].mxu0
        %v589 = vadd.f32 %v509, %v588
        %590 = vdwg.mxu0
        %v591 = vsub.f32 %v287, 1.0
        %v592 = vsub.f32 %v288, 1.0
        %v593 = vsub.f32 %v289, 1.0
        %v594 = vsub.f32 %v290, 1.0
        %v595 = vsub.f32 %v291, 1.0
        %v596 = vsub.f32 %v292, 1.0
        %v597 = vsub.f32 %v293, 1.0
        %v598 = vsub.f32 %v294, 1.0
        %v599 = vsub.f32 %v295, 1.0
        %v600 = vsub.f32 %v296, 1.0
        %v601 = vand.u32 2147483647, %v591
        %v602 = vand.u32 2147483647, %v592
        %v603 = vand.u32 2147483647, %v593
        %v604 = vand.u32 2147483647, %v594
        %v605 = vand.u32 2147483647, %v595
        %v606 = vand.u32 2147483647, %v596
        %v607 = vand.u32 2147483647, %v597
        %v608 = vand.u32 2147483647, %v598
        %v609 = vand.u32 2147483647, %v599
        %v610 = vand.u32 2147483647, %v600
        %v611 = vmul.f32 %v601, %v601
        %v612 = vmul.f32 %v602, %v602
        %v613 = vmul.f32 %v603, %v603
        %v614 = vmul.f32 %v604, %v604
        %v615 = vmul.f32 %v605, %v605
        %v616 = vmul.f32 %v606, %v606
        %v617 = vmul.f32 %v607, %v607
        %v618 = vmul.f32 %v608, %v608
        %v619 = vmul.f32 %v609, %v609
        %v620 = vmul.f32 %v610, %v610
        %v621 = vmul.f32 %v601, 0.5
        %v622 = vmul.f32 %v602, 0.5
        %v623 = vmul.f32 %v603, 0.5
        %v624 = vmul.f32 %v604, 0.5
        %v625 = vmul.f32 %v605, 0.5
        %v626 = vmul.f32 %v606, 0.5
        %v627 = vmul.f32 %v607, 0.5
        %v628 = vmul.f32 %v608, 0.5
        %v629 = vmul.f32 %v609, 0.5
        %v630 = vmul.f32 %v610, 0.5
        %v631 = vsub.f32 %v621, 1.0
        %v632 = vsub.f32 %v622, 1.0
        %v633 = vsub.f32 %v623, 1.0
        %v634 = vsub.f32 %v624, 1.0
        %v635 = vsub.f32 %v625, 1.0
        %v636 = vsub.f32 %v626, 1.0
        %v637 = vsub.f32 %v627, 1.0
        %v638 = vsub.f32 %v628, 1.0
        %v639 = vsub.f32 %v629, 1.0
        %v640 = vsub.f32 %v630, 1.0
        %v641 = vmul.f32 %v631, %v611
        %v642 = vmul.f32 %v632, %v612
        %v643 = vmul.f32 %v633, %v613
        %v644 = vmul.f32 %v634, %v614
        %v645 = vmul.f32 %v635, %v615
        %v646 = vmul.f32 %v636, %v616
        %v647 = vmul.f32 %v637, %v617
        %v648 = vmul.f32 %v638, %v618
        %v649 = vmul.f32 %v639, %v619
        %v650 = vmul.f32 %v640, %v620
        %v651 = vadd.f32 %v641, 0.6666667
        %v652 = vadd.f32 %v642, 0.6666667
        %v653 = vadd.f32 %v643, 0.6666667
        %v654 = vadd.f32 %v644, 0.6666667
        %v655 = vadd.f32 %v645, 0.6666667
        %v656 = vadd.f32 %v646, 0.6666667
        %v657 = vadd.f32 %v647, 0.6666667
        %v658 = vadd.f32 %v648, 0.6666667
        %v659 = vadd.f32 %v649, 0.6666667
        %v660 = vadd.f32 %v650, 0.6666667
        %v661 = vsub.f32 2.0, %v601
        %v662 = vsub.f32 2.0, %v602
        %v663 = vsub.f32 2.0, %v603
        %v664 = vsub.f32 2.0, %v604
        %v665 = vsub.f32 2.0, %v605
        %v666 = vsub.f32 2.0, %v606
        %v667 = vsub.f32 2.0, %v607
        %v668 = vsub.f32 2.0, %v608
        %v669 = vsub.f32 2.0, %v609
        %v670 = vsub.f32 2.0, %v610
        %v671 = vmax.f32 %v661, 0.0
        %v672 = vmax.f32 %v662, 0.0
        %v673 = vmax.f32 %v663, 0.0
        %v674 = vmax.f32 %v664, 0.0
        %v675 = vmax.f32 %v665, 0.0
        %v676 = vmax.f32 %v666, 0.0
        %v677 = vmax.f32 %v667, 0.0
        %v678 = vmax.f32 %v668, 0.0
        %v679 = vmax.f32 %v669, 0.0
        %v680 = vmax.f32 %v670, 0.0
        %v681 = vmul.f32 %v671, %v671
        %v682 = vmul.f32 %v672, %v672
        %v683 = vmul.f32 %v673, %v673
        %v684 = vmul.f32 %v674, %v674
        %v685 = vmul.f32 %v675, %v675
        %v686 = vmul.f32 %v676, %v676
        %v687 = vmul.f32 %v677, %v677
        %v688 = vmul.f32 %v678, %v678
        %v689 = vmul.f32 %v679, %v679
        %v690 = vmul.f32 %v680, %v680
        %v691 = vmul.f32 %v671, 0.16666667
        %v692 = vmul.f32 %v672, 0.16666667
        %v693 = vmul.f32 %v673, 0.16666667
        %v694 = vmul.f32 %v674, 0.16666667
        %v695 = vmul.f32 %v675, 0.16666667
        %v696 = vmul.f32 %v676, 0.16666667
        %v697 = vmul.f32 %v677, 0.16666667
        %v698 = vmul.f32 %v678, 0.16666667
        %v699 = vmul.f32 %v679, 0.16666667
        %v700 = vmul.f32 %v680, 0.16666667
        %v701 = vmul.f32 %v681, %v691
        %v702 = vmul.f32 %v682, %v692
        %v703 = vmul.f32 %v683, %v693
        %v704 = vmul.f32 %v684, %v694
        %v705 = vmul.f32 %v685, %v695
        %v706 = vmul.f32 %v686, %v696
        %v707 = vmul.f32 %v687, %v697
        %v708 = vmul.f32 %v688, %v698
        %v709 = vmul.f32 %v689, %v699
        %v710 = vmul.f32 %v690, %v700
        %vm711 = vcmp.lt.f32.partialorder %v601, 1.0
        %vm712 = vcmp.lt.f32.partialorder %v602, 1.0
        %vm713 = vcmp.lt.f32.partialorder %v603, 1.0
        %vm714 = vcmp.lt.f32.partialorder %v604, 1.0
        %vm715 = vcmp.lt.f32.partialorder %v605, 1.0
        %vm716 = vcmp.lt.f32.partialorder %v606, 1.0
        %vm717 = vcmp.lt.f32.partialorder %v607, 1.0
        %vm718 = vcmp.lt.f32.partialorder %v608, 1.0
        %vm719 = vcmp.lt.f32.partialorder %v609, 1.0
        %vm720 = vcmp.lt.f32.partialorder %v610, 1.0
        %v721 = vsel %vm711, %v651, %v701
        %v722 = vsel %vm712, %v652, %v702
        %v723 = vsel %vm713, %v653, %v703
        %v724 = vsel %vm714, %v654, %v704
        %v725 = vsel %vm715, %v655, %v705
        %v726 = vsel %vm716, %v656, %v706
        %v727 = vsel %vm717, %v657, %v707
        %v728 = vsel %vm718, %v658, %v708
        %v729 = vsel %vm719, %v659, %v709
        %v730 = vsel %vm720, %v660, %v710
        %s731 = scalar_lea.vmem [#allocation5], 8
        %v732 = vld [vmem:[%s731] sm:$0xf]
        %v734 = vsel %vm429, %v732, 0
        %v737 = vsel %vm433, %v729, 0
        %v740 = vsel %vm433, %v730, 0
        %742 = vmatprep.subr.mxu0 %v722
        %743 = vmatpush1.msra.mxu0 %v721
        %744 = vmatprep.subr.mxu0 %v724
        %745 = vmatpush1.msra.mxu0 %v723
        %746 = vmatprep.subr.mxu0 %v726
        %747 = vmatpush1.msra.mxu0 %v725
        %748 = vmatprep.subr.mxu0 %v728
        %749 = vmatpush1.msra.mxu0 %v727
        %750 = vmatprep.subr.mxu0 %v740
        %751 = vmatpush1.msra.mxu0 %v737
        %752 = vmatprep.subr.mxu0 0.0
        %753 = vmatpush1.msra.mxu0 0.0
        %754 = vmatprep.subr.mxu0 0.0
        %755 = vmatpush1.msra.mxu0 0.0
        %756 = vmatprep.subr.mxu0 0.0
        %757 = vmatpush1.msra.mxu0 0.0
        %758 = vmatprep.subr.mxu0 0.0
        %759 = vmatpush1.msra.mxu0 0.0
        %760 = vmatprep.subr.mxu0 0.0
        %761 = vmatpush1.msra.mxu0 0.0
        %762 = vmatprep.subr.mxu0 0.0
        %763 = vmatpush1.msra.mxu0 0.0
        %764 = vmatprep.subr.mxu0 0.0
        %765 = vmatpush1.msra.mxu0 0.0
        %766 = vmatprep.subr.mxu0 0.0
        %767 = vmatpush1.msra.mxu0 0.0
        %768 = vmatprep.subr.mxu0 0.0
        %769 = vmatpush1.msra.mxu0 0.0
        %770 = vmatprep.subr.mxu0 0.0
        %771 = vmatpush1.msra.mxu0 0.0
        %772 = vmatprep.subr.mxu0 0.0
        %773 = vmatpush1.msra.mxu0 0.0
        %774 = vmatprep.subr.mxu0 0.0
        %775 = vmatpush1.msra.mxu0 0.0
        %776 = vmatprep.subr.mxu0 0.0
        %777 = vmatpush1.msra.mxu0 0.0
        %778 = vmatprep.subr.mxu0 0.0
        %779 = vmatpush1.msra.mxu0 0.0
        %780 = vmatprep.subr.mxu0 0.0
        %781 = vmatpush1.msra.mxu0 0.0
        %782 = vmatprep.subr.mxu0 0.0
        %783 = vmatpush1.msra.mxu0 0.0
        %784 = vmatprep.subr.mxu0 0.0
        %785 = vmatpush1.msra.mxu0 0.0
        %786 = vmatprep.subr.mxu0 0.0
        %787 = vmatpush1.msra.mxu0 0.0
        %788 = vmatprep.subr.mxu0 0.0
        %789 = vmatpush1.msra.mxu0 0.0
        %790 = vmatprep.subr.mxu0 0.0
        %791 = vmatpush1.msra.mxu0 0.0
        %792 = vmatprep.subr.mxu0 0.0
        %793 = vmatpush1.msra.mxu0 0.0
        %794 = vmatprep.subr.mxu0 0.0
        %795 = vmatpush1.msra.mxu0 0.0
        %796 = vmatprep.subr.mxu0 0.0
        %797 = vmatpush1.msra.mxu0 0.0
        %798 = vmatprep.subr.mxu0 0.0
        %799 = vmatpush1.msra.mxu0 0.0
        %800 = vmatprep.subr.mxu0 0.0
        %801 = vmatpush1.msra.mxu0 0.0
        %802 = vmatprep.subr.mxu0 0.0
        %803 = vmatpush1.msra.mxu0 0.0
        %804 = vmatprep.subr.mxu0 0.0
        %805 = vmatpush1.msra.mxu0 0.0
        %806 = vmatprep.mubr.f32.mxu0 0.0
        %807 = vmatmul.mubr.f32.gmra.mrb[0].mxu0 %v734
        %v808 = vpop.f32.mrb[0].mxu0
        %v809 = vadd.f32 0.0, %v808
        %v810 = vpop.f32.mrb[0].mxu0
        %v811 = vadd.f32 0.0, %v810
        %812 = vdwg.mxu0
        %v813 = vadd.f32 %v587, %v809
        %v814 = vadd.f32 %v589, %v811
        %v815 = vsub.f32 %v287, 2.0
        %v816 = vsub.f32 %v288, 2.0
        %v817 = vsub.f32 %v289, 2.0
        %v818 = vsub.f32 %v290, 2.0
        %v819 = vsub.f32 %v291, 2.0
        %v820 = vsub.f32 %v292, 2.0
        %v821 = vsub.f32 %v293, 2.0
        %v822 = vsub.f32 %v294, 2.0
        %v823 = vsub.f32 %v295, 2.0
        %v824 = vsub.f32 %v296, 2.0
        %v825 = vand.u32 2147483647, %v815
        %v826 = vand.u32 2147483647, %v816
        %v827 = vand.u32 2147483647, %v817
        %v828 = vand.u32 2147483647, %v818
        %v829 = vand.u32 2147483647, %v819
        %v830 = vand.u32 2147483647, %v820
        %v831 = vand.u32 2147483647, %v821
        %v832 = vand.u32 2147483647, %v822
        %v833 = vand.u32 2147483647, %v823
        %v834 = vand.u32 2147483647, %v824
        %v835 = vmul.f32 %v825, %v825
        %v836 = vmul.f32 %v826, %v826
        %v837 = vmul.f32 %v827, %v827
        %v838 = vmul.f32 %v828, %v828
        %v839 = vmul.f32 %v829, %v829
        %v840 = vmul.f32 %v830, %v830
        %v841 = vmul.f32 %v831, %v831
        %v842 = vmul.f32 %v832, %v832
        %v843 = vmul.f32 %v833, %v833
        %v844 = vmul.f32 %v834, %v834
        %v845 = vmul.f32 %v825, 0.5
        %v846 = vmul.f32 %v826, 0.5
        %v847 = vmul.f32 %v827, 0.5
        %v848 = vmul.f32 %v828, 0.5
        %v849 = vmul.f32 %v829, 0.5
        %v850 = vmul.f32 %v830, 0.5
        %v851 = vmul.f32 %v831, 0.5
        %v852 = vmul.f32 %v832, 0.5
        %v853 = vmul.f32 %v833, 0.5
        %v854 = vmul.f32 %v834, 0.5
        %v855 = vsub.f32 %v845, 1.0
        %v856 = vsub.f32 %v846, 1.0
        %v857 = vsub.f32 %v847, 1.0
        %v858 = vsub.f32 %v848, 1.0
        %v859 = vsub.f32 %v849, 1.0
        %v860 = vsub.f32 %v850, 1.0
        %v861 = vsub.f32 %v851, 1.0
        %v862 = vsub.f32 %v852, 1.0
        %v863 = vsub.f32 %v853, 1.0
        %v864 = vsub.f32 %v854, 1.0
        %v865 = vmul.f32 %v855, %v835
        %v866 = vmul.f32 %v856, %v836
        %v867 = vmul.f32 %v857, %v837
        %v868 = vmul.f32 %v858, %v838
        %v869 = vmul.f32 %v859, %v839
        %v870 = vmul.f32 %v860, %v840
        %v871 = vmul.f32 %v861, %v841
        %v872 = vmul.f32 %v862, %v842
        %v873 = vmul.f32 %v863, %v843
        %v874 = vmul.f32 %v864, %v844
        %v875 = vadd.f32 %v865, 0.6666667
        %v876 = vadd.f32 %v866, 0.6666667
        %v877 = vadd.f32 %v867, 0.6666667
        %v878 = vadd.f32 %v868, 0.6666667
        %v879 = vadd.f32 %v869, 0.6666667
        %v880 = vadd.f32 %v870, 0.6666667
        %v881 = vadd.f32 %v871, 0.6666667
        %v882 = vadd.f32 %v872, 0.6666667
        %v883 = vadd.f32 %v873, 0.6666667
        %v884 = vadd.f32 %v874, 0.6666667
        %v885 = vsub.f32 2.0, %v825
        %v886 = vsub.f32 2.0, %v826
        %v887 = vsub.f32 2.0, %v827
        %v888 = vsub.f32 2.0, %v828
        %v889 = vsub.f32 2.0, %v829
        %v890 = vsub.f32 2.0, %v830
        %v891 = vsub.f32 2.0, %v831
        %v892 = vsub.f32 2.0, %v832
        %v893 = vsub.f32 2.0, %v833
        %v894 = vsub.f32 2.0, %v834
        %v895 = vmax.f32 %v885, 0.0
        %v896 = vmax.f32 %v886, 0.0
        %v897 = vmax.f32 %v887, 0.0
        %v898 = vmax.f32 %v888, 0.0
        %v899 = vmax.f32 %v889, 0.0
        %v900 = vmax.f32 %v890, 0.0
        %v901 = vmax.f32 %v891, 0.0
        %v902 = vmax.f32 %v892, 0.0
        %v903 = vmax.f32 %v893, 0.0
        %v904 = vmax.f32 %v894, 0.0
        %v905 = vmul.f32 %v895, %v895
        %v906 = vmul.f32 %v896, %v896
        %v907 = vmul.f32 %v897, %v897
        %v908 = vmul.f32 %v898, %v898
        %v909 = vmul.f32 %v899, %v899
        %v910 = vmul.f32 %v900, %v900
        %v911 = vmul.f32 %v901, %v901
        %v912 = vmul.f32 %v902, %v902
        %v913 = vmul.f32 %v903, %v903
        %v914 = vmul.f32 %v904, %v904
        %v915 = vmul.f32 %v895, 0.16666667
        %v916 = vmul.f32 %v896, 0.16666667
        %v917 = vmul.f32 %v897, 0.16666667
        %v918 = vmul.f32 %v898, 0.16666667
        %v919 = vmul.f32 %v899, 0.16666667
        %v920 = vmul.f32 %v900, 0.16666667
        %v921 = vmul.f32 %v901, 0.16666667
        %v922 = vmul.f32 %v902, 0.16666667
        %v923 = vmul.f32 %v903, 0.16666667
        %v924 = vmul.f32 %v904, 0.16666667
        %v925 = vmul.f32 %v905, %v915
        %v926 = vmul.f32 %v906, %v916
        %v927 = vmul.f32 %v907, %v917
        %v928 = vmul.f32 %v908, %v918
        %v929 = vmul.f32 %v909, %v919
        %v930 = vmul.f32 %v910, %v920
        %v931 = vmul.f32 %v911, %v921
        %v932 = vmul.f32 %v912, %v922
        %v933 = vmul.f32 %v913, %v923
        %v934 = vmul.f32 %v914, %v924
        %vm935 = vcmp.lt.f32.partialorder %v825, 1.0
        %vm936 = vcmp.lt.f32.partialorder %v826, 1.0
        %vm937 = vcmp.lt.f32.partialorder %v827, 1.0
        %vm938 = vcmp.lt.f32.partialorder %v828, 1.0
        %vm939 = vcmp.lt.f32.partialorder %v829, 1.0
        %vm940 = vcmp.lt.f32.partialorder %v830, 1.0
        %vm941 = vcmp.lt.f32.partialorder %v831, 1.0
        %vm942 = vcmp.lt.f32.partialorder %v832, 1.0
        %vm943 = vcmp.lt.f32.partialorder %v833, 1.0
        %vm944 = vcmp.lt.f32.partialorder %v834, 1.0
        %v945 = vsel %vm935, %v875, %v925
        %v946 = vsel %vm936, %v876, %v926
        %v947 = vsel %vm937, %v877, %v927
        %v948 = vsel %vm938, %v878, %v928
        %v949 = vsel %vm939, %v879, %v929
        %v950 = vsel %vm940, %v880, %v930
        %v951 = vsel %vm941, %v881, %v931
        %v952 = vsel %vm942, %v882, %v932
        %v953 = vsel %vm943, %v883, %v933
        %v954 = vsel %vm944, %v884, %v934
        %s955 = scalar_lea.vmem [#allocation5], 12
        %v956 = vld [vmem:[%s955] sm:$0xf]
        %v958 = vsel %vm429, %v956, 0
        %v961 = vsel %vm433, %v953, 0
        %v964 = vsel %vm433, %v954, 0
        %966 = vmatprep.subr.mxu0 %v946
        %967 = vmatpush1.msra.mxu0 %v945
        %968 = vmatprep.subr.mxu0 %v948
        %969 = vmatpush1.msra.mxu0 %v947
        %970 = vmatprep.subr.mxu0 %v950
        %971 = vmatpush1.msra.mxu0 %v949
        %972 = vmatprep.subr.mxu0 %v952
        %973 = vmatpush1.msra.mxu0 %v951
        %974 = vmatprep.subr.mxu0 %v964
        %975 = vmatpush1.msra.mxu0 %v961
        %976 = vmatprep.subr.mxu0 0.0
        %977 = vmatpush1.msra.mxu0 0.0
        %978 = vmatprep.subr.mxu0 0.0
        %979 = vmatpush1.msra.mxu0 0.0
        %980 = vmatprep.subr.mxu0 0.0
        %981 = vmatpush1.msra.mxu0 0.0
        %982 = vmatprep.subr.mxu0 0.0
        %983 = vmatpush1.msra.mxu0 0.0
        %984 = vmatprep.subr.mxu0 0.0
        %985 = vmatpush1.msra.mxu0 0.0
        %986 = vmatprep.subr.mxu0 0.0
        %987 = vmatpush1.msra.mxu0 0.0
        %988 = vmatprep.subr.mxu0 0.0
        %989 = vmatpush1.msra.mxu0 0.0
        %990 = vmatprep.subr.mxu0 0.0
        %991 = vmatpush1.msra.mxu0 0.0
        %992 = vmatprep.subr.mxu0 0.0
        %993 = vmatpush1.msra.mxu0 0.0
        %994 = vmatprep.subr.mxu0 0.0
        %995 = vmatpush1.msra.mxu0 0.0
        %996 = vmatprep.subr.mxu0 0.0
        %997 = vmatpush1.msra.mxu0 0.0
        %998 = vmatprep.subr.mxu0 0.0
        %999 = vmatpush1.msra.mxu0 0.0
        %1000 = vmatprep.subr.mxu0 0.0
        %1001 = vmatpush1.msra.mxu0 0.0
        %1002 = vmatprep.subr.mxu0 0.0
        %1003 = vmatpush1.msra.mxu0 0.0
        %1004 = vmatprep.subr.mxu0 0.0
        %1005 = vmatpush1.msra.mxu0 0.0
        %1006 = vmatprep.subr.mxu0 0.0
        %1007 = vmatpush1.msra.mxu0 0.0
        %1008 = vmatprep.subr.mxu0 0.0
        %1009 = vmatpush1.msra.mxu0 0.0
        %1010 = vmatprep.subr.mxu0 0.0
        %1011 = vmatpush1.msra.mxu0 0.0
        %1012 = vmatprep.subr.mxu0 0.0
        %1013 = vmatpush1.msra.mxu0 0.0
        %1014 = vmatprep.subr.mxu0 0.0
        %1015 = vmatpush1.msra.mxu0 0.0
        %1016 = vmatprep.subr.mxu0 0.0
        %1017 = vmatpush1.msra.mxu0 0.0
        %1018 = vmatprep.subr.mxu0 0.0
        %1019 = vmatpush1.msra.mxu0 0.0
        %1020 = vmatprep.subr.mxu0 0.0
        %1021 = vmatpush1.msra.mxu0 0.0
        %1022 = vmatprep.subr.mxu0 0.0
        %1023 = vmatpush1.msra.mxu0 0.0
        %1024 = vmatprep.subr.mxu0 0.0
        %1025 = vmatpush1.msra.mxu0 0.0
        %1026 = vmatprep.subr.mxu0 0.0
        %1027 = vmatpush1.msra.mxu0 0.0
        %1028 = vmatprep.subr.mxu0 0.0
        %1029 = vmatpush1.msra.mxu0 0.0
        %1030 = vmatprep.mubr.f32.mxu0 0.0
        %1031 = vmatmul.mubr.f32.gmra.mrb[0].mxu0 %v958
        %v1032 = vpop.f32.mrb[0].mxu0
        %v1033 = vadd.f32 0.0, %v1032
        %v1034 = vpop.f32.mrb[0].mxu0
        %v1035 = vadd.f32 0.0, %v1034
        %1036 = vdwg.mxu0
        %v1037 = vadd.f32 %v813, %v1033
        %v1038 = vadd.f32 %v814, %v1035
        %v1039 = vsub.f32 %v287, 3.0
        %v1040 = vsub.f32 %v288, 3.0
        %v1041 = vsub.f32 %v289, 3.0
        %v1042 = vsub.f32 %v290, 3.0
        %v1043 = vsub.f32 %v291, 3.0
        %v1044 = vsub.f32 %v292, 3.0
        %v1045 = vsub.f32 %v293, 3.0
        %v1046 = vsub.f32 %v294, 3.0
        %v1047 = vsub.f32 %v295, 3.0
        %v1048 = vsub.f32 %v296, 3.0
        %v1049 = vand.u32 2147483647, %v1039
        %v1050 = vand.u32 2147483647, %v1040
        %v1051 = vand.u32 2147483647, %v1041
        %v1052 = vand.u32 2147483647, %v1042
        %v1053 = vand.u32 2147483647, %v1043
        %v1054 = vand.u32 2147483647, %v1044
        %v1055 = vand.u32 2147483647, %v1045
        %v1056 = vand.u32 2147483647, %v1046
        %v1057 = vand.u32 2147483647, %v1047
        %v1058 = vand.u32 2147483647, %v1048
        %v1059 = vmul.f32 %v1049, %v1049
        %v1060 = vmul.f32 %v1050, %v1050
        %v1061 = vmul.f32 %v1051, %v1051
        %v1062 = vmul.f32 %v1052, %v1052
        %v1063 = vmul.f32 %v1053, %v1053
        %v1064 = vmul.f32 %v1054, %v1054
        %v1065 = vmul.f32 %v1055, %v1055
        %v1066 = vmul.f32 %v1056, %v1056
        %v1067 = vmul.f32 %v1057, %v1057
        %v1068 = vmul.f32 %v1058, %v1058
        %v1069 = vmul.f32 %v1049, 0.5
        %v1070 = vmul.f32 %v1050, 0.5
        %v1071 = vmul.f32 %v1051, 0.5
        %v1072 = vmul.f32 %v1052, 0.5
        %v1073 = vmul.f32 %v1053, 0.5
        %v1074 = vmul.f32 %v1054, 0.5
        %v1075 = vmul.f32 %v1055, 0.5
        %v1076 = vmul.f32 %v1056, 0.5
        %v1077 = vmul.f32 %v1057, 0.5
        %v1078 = vmul.f32 %v1058, 0.5
        %v1079 = vsub.f32 %v1069, 1.0
        %v1080 = vsub.f32 %v1070, 1.0
        %v1081 = vsub.f32 %v1071, 1.0
        %v1082 = vsub.f32 %v1072, 1.0
        %v1083 = vsub.f32 %v1073, 1.0
        %v1084 = vsub.f32 %v1074, 1.0
        %v1085 = vsub.f32 %v1075, 1.0
        %v1086 = vsub.f32 %v1076, 1.0
        %v1087 = vsub.f32 %v1077, 1.0
        %v1088 = vsub.f32 %v1078, 1.0
        %v1089 = vmul.f32 %v1079, %v1059
        %v1090 = vmul.f32 %v1080, %v1060
        %v1091 = vmul.f32 %v1081, %v1061
        %v1092 = vmul.f32 %v1082, %v1062
        %v1093 = vmul.f32 %v1083, %v1063
        %v1094 = vmul.f32 %v1084, %v1064
        %v1095 = vmul.f32 %v1085, %v1065
        %v1096 = vmul.f32 %v1086, %v1066
        %v1097 = vmul.f32 %v1087, %v1067
        %v1098 = vmul.f32 %v1088, %v1068
        %v1099 = vadd.f32 %v1089, 0.6666667
        %v1100 = vadd.f32 %v1090, 0.6666667
        %v1101 = vadd.f32 %v1091, 0.6666667
        %v1102 = vadd.f32 %v1092, 0.6666667
        %v1103 = vadd.f32 %v1093, 0.6666667
        %v1104 = vadd.f32 %v1094, 0.6666667
        %v1105 = vadd.f32 %v1095, 0.6666667
        %v1106 = vadd.f32 %v1096, 0.6666667
        %v1107 = vadd.f32 %v1097, 0.6666667
        %v1108 = vadd.f32 %v1098, 0.6666667
        %v1109 = vsub.f32 2.0, %v1049
        %v1110 = vsub.f32 2.0, %v1050
        %v1111 = vsub.f32 2.0, %v1051
        %v1112 = vsub.f32 2.0, %v1052
        %v1113 = vsub.f32 2.0, %v1053
        %v1114 = vsub.f32 2.0, %v1054
        %v1115 = vsub.f32 2.0, %v1055
        %v1116 = vsub.f32 2.0, %v1056
        %v1117 = vsub.f32 2.0, %v1057
        %v1118 = vsub.f32 2.0, %v1058
        %v1119 = vmax.f32 %v1109, 0.0
        %v1120 = vmax.f32 %v1110, 0.0
        %v1121 = vmax.f32 %v1111, 0.0
        %v1122 = vmax.f32 %v1112, 0.0
        %v1123 = vmax.f32 %v1113, 0.0
        %v1124 = vmax.f32 %v1114, 0.0
        %v1125 = vmax.f32 %v1115, 0.0
        %v1126 = vmax.f32 %v1116, 0.0
        %v1127 = vmax.f32 %v1117, 0.0
        %v1128 = vmax.f32 %v1118, 0.0
        %v1129 = vmul.f32 %v1119, %v1119
        %v1130 = vmul.f32 %v1120, %v1120
        %v1131 = vmul.f32 %v1121, %v1121
        %v1132 = vmul.f32 %v1122, %v1122
        %v1133 = vmul.f32 %v1123, %v1123
        %v1134 = vmul.f32 %v1124, %v1124
        %v1135 = vmul.f32 %v1125, %v1125
        %v1136 = vmul.f32 %v1126, %v1126
        %v1137 = vmul.f32 %v1127, %v1127
        %v1138 = vmul.f32 %v1128, %v1128
        %v1139 = vmul.f32 %v1119, 0.16666667
        %v1140 = vmul.f32 %v1120, 0.16666667
        %v1141 = vmul.f32 %v1121, 0.16666667
        %v1142 = vmul.f32 %v1122, 0.16666667
        %v1143 = vmul.f32 %v1123, 0.16666667
        %v1144 = vmul.f32 %v1124, 0.16666667
        %v1145 = vmul.f32 %v1125, 0.16666667
        %v1146 = vmul.f32 %v1126, 0.16666667
        %v1147 = vmul.f32 %v1127, 0.16666667
        %v1148 = vmul.f32 %v1128, 0.16666667
        %v1149 = vmul.f32 %v1129, %v1139
        %v1150 = vmul.f32 %v1130, %v1140
        %v1151 = vmul.f32 %v1131, %v1141
        %v1152 = vmul.f32 %v1132, %v1142
        %v1153 = vmul.f32 %v1133, %v1143
        %v1154 = vmul.f32 %v1134, %v1144
        %v1155 = vmul.f32 %v1135, %v1145
        %v1156 = vmul.f32 %v1136, %v1146
        %v1157 = vmul.f32 %v1137, %v1147
        %v1158 = vmul.f32 %v1138, %v1148
        %vm1159 = vcmp.lt.f32.partialorder %v1049, 1.0
        %vm1160 = vcmp.lt.f32.partialorder %v1050, 1.0
        %vm1161 = vcmp.lt.f32.partialorder %v1051, 1.0
        %vm1162 = vcmp.lt.f32.partialorder %v1052, 1.0
        %vm1163 = vcmp.lt.f32.partialorder %v1053, 1.0
        %vm1164 = vcmp.lt.f32.partialorder %v1054, 1.0
        %vm1165 = vcmp.lt.f32.partialorder %v1055, 1.0
        %vm1166 = vcmp.lt.f32.partialorder %v1056, 1.0
        %vm1167 = vcmp.lt.f32.partialorder %v1057, 1.0
        %vm1168 = vcmp.lt.f32.partialorder %v1058, 1.0
        %v1169 = vsel %vm1159, %v1099, %v1149
        %v1170 = vsel %vm1160, %v1100, %v1150
        %v1171 = vsel %vm1161, %v1101, %v1151
        %v1172 = vsel %vm1162, %v1102, %v1152
        %v1173 = vsel %vm1163, %v1103, %v1153
        %v1174 = vsel %vm1164, %v1104, %v1154
        %v1175 = vsel %vm1165, %v1105, %v1155
        %v1176 = vsel %vm1166, %v1106, %v1156
        %v1177 = vsel %vm1167, %v1107, %v1157
        %v1178 = vsel %vm1168, %v1108, %v1158
        %s1179 = scalar_lea.vmem [#allocation5], 16
        %v1180 = vld [vmem:[%s1179] sm:$0xf]
        %v1182 = vsel %vm429, %v1180, 0
        %v1185 = vsel %vm433, %v1177, 0
        %v1188 = vsel %vm433, %v1178, 0
        %1190 = vmatprep.subr.mxu0 %v1170
        %1191 = vmatpush1.msra.mxu0 %v1169
        %1192 = vmatprep.subr.mxu0 %v1172
        %1193 = vmatpush1.msra.mxu0 %v1171
        %1194 = vmatprep.subr.mxu0 %v1174
        %1195 = vmatpush1.msra.mxu0 %v1173
        %1196 = vmatprep.subr.mxu0 %v1176
        %1197 = vmatpush1.msra.mxu0 %v1175
        %1198 = vmatprep.subr.mxu0 %v1188
        %1199 = vmatpush1.msra.mxu0 %v1185
        %1200 = vmatprep.subr.mxu0 0.0
        %1201 = vmatpush1.msra.mxu0 0.0
        %1202 = vmatprep.subr.mxu0 0.0
        %1203 = vmatpush1.msra.mxu0 0.0
        %1204 = vmatprep.subr.mxu0 0.0
        %1205 = vmatpush1.msra.mxu0 0.0
        %1206 = vmatprep.subr.mxu0 0.0
        %1207 = vmatpush1.msra.mxu0 0.0
        %1208 = vmatprep.subr.mxu0 0.0
        %1209 = vmatpush1.msra.mxu0 0.0
        %1210 = vmatprep.subr.mxu0 0.0
        %1211 = vmatpush1.msra.mxu0 0.0
        %1212 = vmatprep.subr.mxu0 0.0
        %1213 = vmatpush1.msra.mxu0 0.0
        %1214 = vmatprep.subr.mxu0 0.0
        %1215 = vmatpush1.msra.mxu0 0.0
        %1216 = vmatprep.subr.mxu0 0.0
        %1217 = vmatpush1.msra.mxu0 0.0
        %1218 = vmatprep.subr.mxu0 0.0
        %1219 = vmatpush1.msra.mxu0 0.0
        %1220 = vmatprep.subr.mxu0 0.0
        %1221 = vmatpush1.msra.mxu0 0.0
        %1222 = vmatprep.subr.mxu0 0.0
        %1223 = vmatpush1.msra.mxu0 0.0
        %1224 = vmatprep.subr.mxu0 0.0
        %1225 = vmatpush1.msra.mxu0 0.0
        %1226 = vmatprep.subr.mxu0 0.0
        %1227 = vmatpush1.msra.mxu0 0.0
        %1228 = vmatprep.subr.mxu0 0.0
        %1229 = vmatpush1.msra.mxu0 0.0
        %1230 = vmatprep.subr.mxu0 0.0
        %1231 = vmatpush1.msra.mxu0 0.0
        %1232 = vmatprep.subr.mxu0 0.0
        %1233 = vmatpush1.msra.mxu0 0.0
        %1234 = vmatprep.subr.mxu0 0.0
        %1235 = vmatpush1.msra.mxu0 0.0
        %1236 = vmatprep.subr.mxu0 0.0
        %1237 = vmatpush1.msra.mxu0 0.0
        %1238 = vmatprep.subr.mxu0 0.0
        %1239 = vmatpush1.msra.mxu0 0.0
        %1240 = vmatprep.subr.mxu0 0.0
        %1241 = vmatpush1.msra.mxu0 0.0
        %1242 = vmatprep.subr.mxu0 0.0
        %1243 = vmatpush1.msra.mxu0 0.0
        %1244 = vmatprep.subr.mxu0 0.0
        %1245 = vmatpush1.msra.mxu0 0.0
        %1246 = vmatprep.subr.mxu0 0.0
        %1247 = vmatpush1.msra.mxu0 0.0
        %1248 = vmatprep.subr.mxu0 0.0
        %1249 = vmatpush1.msra.mxu0 0.0
        %1250 = vmatprep.subr.mxu0 0.0
        %1251 = vmatpush1.msra.mxu0 0.0
        %1252 = vmatprep.subr.mxu0 0.0
        %1253 = vmatpush1.msra.mxu0 0.0
        %1254 = vmatprep.mubr.f32.mxu0 0.0
        %1255 = vmatmul.mubr.f32.gmra.mrb[0].mxu0 %v1182
        %v1256 = vpop.f32.mrb[0].mxu0
        %v1257 = vadd.f32 0.0, %v1256
        %v1258 = vpop.f32.mrb[0].mxu0
        %v1259 = vadd.f32 0.0, %v1258
        %1260 = vdwg.mxu0
        %v1261 = vadd.f32 %v1037, %v1257
        %v1262 = vadd.f32 %v1038, %v1259
        %v1263 = vsub.f32 %v287, 4.0
        %v1264 = vsub.f32 %v288, 4.0
        %v1265 = vsub.f32 %v289, 4.0
        %v1266 = vsub.f32 %v290, 4.0
        %v1267 = vsub.f32 %v291, 4.0
        %v1268 = vsub.f32 %v292, 4.0
        %v1269 = vsub.f32 %v293, 4.0
        %v1270 = vsub.f32 %v294, 4.0
        %v1271 = vsub.f32 %v295, 4.0
        %v1272 = vsub.f32 %v296, 4.0
        %v1273 = vand.u32 2147483647, %v1263
        %v1274 = vand.u32 2147483647, %v1264
        %v1275 = vand.u32 2147483647, %v1265
        %v1276 = vand.u32 2147483647, %v1266
        %v1277 = vand.u32 2147483647, %v1267
        %v1278 = vand.u32 2147483647, %v1268
        %v1279 = vand.u32 2147483647, %v1269
        %v1280 = vand.u32 2147483647, %v1270
        %v1281 = vand.u32 2147483647, %v1271
        %v1282 = vand.u32 2147483647, %v1272
        %v1283 = vmul.f32 %v1273, %v1273
        %v1284 = vmul.f32 %v1274, %v1274
        %v1285 = vmul.f32 %v1275, %v1275
        %v1286 = vmul.f32 %v1276, %v1276
        %v1287 = vmul.f32 %v1277, %v1277
        %v1288 = vmul.f32 %v1278, %v1278
        %v1289 = vmul.f32 %v1279, %v1279
        %v1290 = vmul.f32 %v1280, %v1280
        %v1291 = vmul.f32 %v1281, %v1281
        %v1292 = vmul.f32 %v1282, %v1282
        %v1293 = vmul.f32 %v1273, 0.5
        %v1294 = vmul.f32 %v1274, 0.5
        %v1295 = vmul.f32 %v1275, 0.5
        %v1296 = vmul.f32 %v1276, 0.5
        %v1297 = vmul.f32 %v1277, 0.5
        %v1298 = vmul.f32 %v1278, 0.5
        %v1299 = vmul.f32 %v1279, 0.5
        %v1300 = vmul.f32 %v1280, 0.5
        %v1301 = vmul.f32 %v1281, 0.5
        %v1302 = vmul.f32 %v1282, 0.5
        %v1303 = vsub.f32 %v1293, 1.0
        %v1304 = vsub.f32 %v1294, 1.0
        %v1305 = vsub.f32 %v1295, 1.0
        %v1306 = vsub.f32 %v1296, 1.0
        %v1307 = vsub.f32 %v1297, 1.0
        %v1308 = vsub.f32 %v1298, 1.0
        %v1309 = vsub.f32 %v1299, 1.0
        %v1310 = vsub.f32 %v1300, 1.0
        %v1311 = vsub.f32 %v1301, 1.0
        %v1312 = vsub.f32 %v1302, 1.0
        %v1313 = vmul.f32 %v1303, %v1283
        %v1314 = vmul.f32 %v1304, %v1284
        %v1315 = vmul.f32 %v1305, %v1285
        %v1316 = vmul.f32 %v1306, %v1286
        %v1317 = vmul.f32 %v1307, %v1287
        %v1318 = vmul.f32 %v1308, %v1288
        %v1319 = vmul.f32 %v1309, %v1289
        %v1320 = vmul.f32 %v1310, %v1290
        %v1321 = vmul.f32 %v1311, %v1291
        %v1322 = vmul.f32 %v1312, %v1292
        %v1323 = vadd.f32 %v1313, 0.6666667
        %v1324 = vadd.f32 %v1314, 0.6666667
        %v1325 = vadd.f32 %v1315, 0.6666667
        %v1326 = vadd.f32 %v1316, 0.6666667
        %v1327 = vadd.f32 %v1317, 0.6666667
        %v1328 = vadd.f32 %v1318, 0.6666667
        %v1329 = vadd.f32 %v1319, 0.6666667
        %v1330 = vadd.f32 %v1320, 0.6666667
        %v1331 = vadd.f32 %v1321, 0.6666667
        %v1332 = vadd.f32 %v1322, 0.6666667
        %v1333 = vsub.f32 2.0, %v1273
        %v1334 = vsub.f32 2.0, %v1274
        %v1335 = vsub.f32 2.0, %v1275
        %v1336 = vsub.f32 2.0, %v1276
        %v1337 = vsub.f32 2.0, %v1277
        %v1338 = vsub.f32 2.0, %v1278
        %v1339 = vsub.f32 2.0, %v1279
        %v1340 = vsub.f32 2.0, %v1280
        %v1341 = vsub.f32 2.0, %v1281
        %v1342 = vsub.f32 2.0, %v1282
        %v1343 = vmax.f32 %v1333, 0.0
        %v1344 = vmax.f32 %v1334, 0.0
        %v1345 = vmax.f32 %v1335, 0.0
        %v1346 = vmax.f32 %v1336, 0.0
        %v1347 = vmax.f32 %v1337, 0.0
        %v1348 = vmax.f32 %v1338, 0.0
        %v1349 = vmax.f32 %v1339, 0.0
        %v1350 = vmax.f32 %v1340, 0.0
        %v1351 = vmax.f32 %v1341, 0.0
        %v1352 = vmax.f32 %v1342, 0.0
        %v1353 = vmul.f32 %v1343, %v1343
        %v1354 = vmul.f32 %v1344, %v1344
        %v1355 = vmul.f32 %v1345, %v1345
        %v1356 = vmul.f32 %v1346, %v1346
        %v1357 = vmul.f32 %v1347, %v1347
        %v1358 = vmul.f32 %v1348, %v1348
        %v1359 = vmul.f32 %v1349, %v1349
        %v1360 = vmul.f32 %v1350, %v1350
        %v1361 = vmul.f32 %v1351, %v1351
        %v1362 = vmul.f32 %v1352, %v1352
        %v1363 = vmul.f32 %v1343, 0.16666667
        %v1364 = vmul.f32 %v1344, 0.16666667
        %v1365 = vmul.f32 %v1345, 0.16666667
        %v1366 = vmul.f32 %v1346, 0.16666667
        %v1367 = vmul.f32 %v1347, 0.16666667
        %v1368 = vmul.f32 %v1348, 0.16666667
        %v1369 = vmul.f32 %v1349, 0.16666667
        %v1370 = vmul.f32 %v1350, 0.16666667
        %v1371 = vmul.f32 %v1351, 0.16666667
        %v1372 = vmul.f32 %v1352, 0.16666667
        %v1373 = vmul.f32 %v1353, %v1363
        %v1374 = vmul.f32 %v1354, %v1364
        %v1375 = vmul.f32 %v1355, %v1365
        %v1376 = vmul.f32 %v1356, %v1366
        %v1377 = vmul.f32 %v1357, %v1367
        %v1378 = vmul.f32 %v1358, %v1368
        %v1379 = vmul.f32 %v1359, %v1369
        %v1380 = vmul.f32 %v1360, %v1370
        %v1381 = vmul.f32 %v1361, %v1371
        %v1382 = vmul.f32 %v1362, %v1372
        %vm1383 = vcmp.lt.f32.partialorder %v1273, 1.0
        %vm1384 = vcmp.lt.f32.partialorder %v1274, 1.0
        %vm1385 = vcmp.lt.f32.partialorder %v1275, 1.0
        %vm1386 = vcmp.lt.f32.partialorder %v1276, 1.0
        %vm1387 = vcmp.lt.f32.partialorder %v1277, 1.0
        %vm1388 = vcmp.lt.f32.partialorder %v1278, 1.0
        %vm1389 = vcmp.lt.f32.partialorder %v1279, 1.0
        %vm1390 = vcmp.lt.f32.partialorder %v1280, 1.0
        %vm1391 = vcmp.lt.f32.partialorder %v1281, 1.0
        %vm1392 = vcmp.lt.f32.partialorder %v1282, 1.0
        %v1393 = vsel %vm1383, %v1323, %v1373
        %v1394 = vsel %vm1384, %v1324, %v1374
        %v1395 = vsel %vm1385, %v1325, %v1375
        %v1396 = vsel %vm1386, %v1326, %v1376
        %v1397 = vsel %vm1387, %v1327, %v1377
        %v1398 = vsel %vm1388, %v1328, %v1378
        %v1399 = vsel %vm1389, %v1329, %v1379
        %v1400 = vsel %vm1390, %v1330, %v1380
        %v1401 = vsel %vm1391, %v1331, %v1381
        %v1402 = vsel %vm1392, %v1332, %v1382
        %s1403 = scalar_lea.vmem [#allocation5], 20
        %v1404 = vld [vmem:[%s1403] sm:$0xf]
        %v1406 = vsel %vm429, %v1404, 0
        %v1409 = vsel %vm433, %v1401, 0
        %v1412 = vsel %vm433, %v1402, 0
        %1414 = vmatprep.subr.mxu0 %v1394
        %1415 = vmatpush1.msra.mxu0 %v1393
        %1416 = vmatprep.subr.mxu0 %v1396
        %1417 = vmatpush1.msra.mxu0 %v1395
        %1418 = vmatprep.subr.mxu0 %v1398
        %1419 = vmatpush1.msra.mxu0 %v1397
        %1420 = vmatprep.subr.mxu0 %v1400
        %1421 = vmatpush1.msra.mxu0 %v1399
        %1422 = vmatprep.subr.mxu0 %v1412
        %1423 = vmatpush1.msra.mxu0 %v1409
        %1424 = vmatprep.subr.mxu0 0.0
        %1425 = vmatpush1.msra.mxu0 0.0
        %1426 = vmatprep.subr.mxu0 0.0
        %1427 = vmatpush1.msra.mxu0 0.0
        %1428 = vmatprep.subr.mxu0 0.0
        %1429 = vmatpush1.msra.mxu0 0.0
        %1430 = vmatprep.subr.mxu0 0.0
        %1431 = vmatpush1.msra.mxu0 0.0
        %1432 = vmatprep.subr.mxu0 0.0
        %1433 = vmatpush1.msra.mxu0 0.0
        %1434 = vmatprep.subr.mxu0 0.0
        %1435 = vmatpush1.msra.mxu0 0.0
        %1436 = vmatprep.subr.mxu0 0.0
        %1437 = vmatpush1.msra.mxu0 0.0
        %1438 = vmatprep.subr.mxu0 0.0
        %1439 = vmatpush1.msra.mxu0 0.0
        %1440 = vmatprep.subr.mxu0 0.0
        %1441 = vmatpush1.msra.mxu0 0.0
        %1442 = vmatprep.subr.mxu0 0.0
        %1443 = vmatpush1.msra.mxu0 0.0
        %1444 = vmatprep.subr.mxu0 0.0
        %1445 = vmatpush1.msra.mxu0 0.0
        %1446 = vmatprep.subr.mxu0 0.0
        %1447 = vmatpush1.msra.mxu0 0.0
        %1448 = vmatprep.subr.mxu0 0.0
        %1449 = vmatpush1.msra.mxu0 0.0
        %1450 = vmatprep.subr.mxu0 0.0
        %1451 = vmatpush1.msra.mxu0 0.0
        %1452 = vmatprep.subr.mxu0 0.0
        %1453 = vmatpush1.msra.mxu0 0.0
        %1454 = vmatprep.subr.mxu0 0.0
        %1455 = vmatpush1.msra.mxu0 0.0
        %1456 = vmatprep.subr.mxu0 0.0
        %1457 = vmatpush1.msra.mxu0 0.0
        %1458 = vmatprep.subr.mxu0 0.0
        %1459 = vmatpush1.msra.mxu0 0.0
        %1460 = vmatprep.subr.mxu0 0.0
        %1461 = vmatpush1.msra.mxu0 0.0
        %1462 = vmatprep.subr.mxu0 0.0
        %1463 = vmatpush1.msra.mxu0 0.0
        %1464 = vmatprep.subr.mxu0 0.0
        %1465 = vmatpush1.msra.mxu0 0.0
        %1466 = vmatprep.subr.mxu0 0.0
        %1467 = vmatpush1.msra.mxu0 0.0
        %1468 = vmatprep.subr.mxu0 0.0
        %1469 = vmatpush1.msra.mxu0 0.0
        %1470 = vmatprep.subr.mxu0 0.0
        %1471 = vmatpush1.msra.mxu0 0.0
        %1472 = vmatprep.subr.mxu0 0.0
        %1473 = vmatpush1.msra.mxu0 0.0
        %1474 = vmatprep.subr.mxu0 0.0
        %1475 = vmatpush1.msra.mxu0 0.0
        %1476 = vmatprep.subr.mxu0 0.0
        %1477 = vmatpush1.msra.mxu0 0.0
        %1478 = vmatprep.mubr.f32.mxu0 0.0
        %1479 = vmatmul.mubr.f32.gmra.mrb[0].mxu0 %v1406
        %v1480 = vpop.f32.mrb[0].mxu0
        %v1481 = vadd.f32 0.0, %v1480
        %v1482 = vpop.f32.mrb[0].mxu0
        %v1483 = vadd.f32 0.0, %v1482
        %1484 = vdwg.mxu0
        %v1485 = vadd.f32 %v1261, %v1481
        %v1486 = vadd.f32 %v1262, %v1483
        %v1487 = vsub.f32 %v287, 5.0
        %v1488 = vsub.f32 %v288, 5.0
        %v1489 = vsub.f32 %v289, 5.0
        %v1490 = vsub.f32 %v290, 5.0
        %v1491 = vsub.f32 %v291, 5.0
        %v1492 = vsub.f32 %v292, 5.0
        %v1493 = vsub.f32 %v293, 5.0
        %v1494 = vsub.f32 %v294, 5.0
        %v1495 = vsub.f32 %v295, 5.0
        %v1496 = vsub.f32 %v296, 5.0
        %v1497 = vand.u32 2147483647, %v1487
        %v1498 = vand.u32 2147483647, %v1488
        %v1499 = vand.u32 2147483647, %v1489
        %v1500 = vand.u32 2147483647, %v1490
        %v1501 = vand.u32 2147483647, %v1491
        %v1502 = vand.u32 2147483647, %v1492
        %v1503 = vand.u32 2147483647, %v1493
        %v1504 = vand.u32 2147483647, %v1494
        %v1505 = vand.u32 2147483647, %v1495
        %v1506 = vand.u32 2147483647, %v1496
        %v1507 = vmul.f32 %v1497, %v1497
        %v1508 = vmul.f32 %v1498, %v1498
        %v1509 = vmul.f32 %v1499, %v1499
        %v1510 = vmul.f32 %v1500, %v1500
        %v1511 = vmul.f32 %v1501, %v1501
        %v1512 = vmul.f32 %v1502, %v1502
        %v1513 = vmul.f32 %v1503, %v1503
        %v1514 = vmul.f32 %v1504, %v1504
        %v1515 = vmul.f32 %v1505, %v1505
        %v1516 = vmul.f32 %v1506, %v1506
        %v1517 = vmul.f32 %v1497, 0.5
        %v1518 = vmul.f32 %v1498, 0.5
        %v1519 = vmul.f32 %v1499, 0.5
        %v1520 = vmul.f32 %v1500, 0.5
        %v1521 = vmul.f32 %v1501, 0.5
        %v1522 = vmul.f32 %v1502, 0.5
        %v1523 = vmul.f32 %v1503, 0.5
        %v1524 = vmul.f32 %v1504, 0.5
        %v1525 = vmul.f32 %v1505, 0.5
        %v1526 = vmul.f32 %v1506, 0.5
        %v1527 = vsub.f32 %v1517, 1.0
        %v1528 = vsub.f32 %v1518, 1.0
        %v1529 = vsub.f32 %v1519, 1.0
        %v1530 = vsub.f32 %v1520, 1.0
        %v1531 = vsub.f32 %v1521, 1.0
        %v1532 = vsub.f32 %v1522, 1.0
        %v1533 = vsub.f32 %v1523, 1.0
        %v1534 = vsub.f32 %v1524, 1.0
        %v1535 = vsub.f32 %v1525, 1.0
        %v1536 = vsub.f32 %v1526, 1.0
        %v1537 = vmul.f32 %v1527, %v1507
        %v1538 = vmul.f32 %v1528, %v1508
        %v1539 = vmul.f32 %v1529, %v1509
        %v1540 = vmul.f32 %v1530, %v1510
        %v1541 = vmul.f32 %v1531, %v1511
        %v1542 = vmul.f32 %v1532, %v1512
        %v1543 = vmul.f32 %v1533, %v1513
        %v1544 = vmul.f32 %v1534, %v1514
        %v1545 = vmul.f32 %v1535, %v1515
        %v1546 = vmul.f32 %v1536, %v1516
        %v1547 = vadd.f32 %v1537, 0.6666667
        %v1548 = vadd.f32 %v1538, 0.6666667
        %v1549 = vadd.f32 %v1539, 0.6666667
        %v1550 = vadd.f32 %v1540, 0.6666667
        %v1551 = vadd.f32 %v1541, 0.6666667
        %v1552 = vadd.f32 %v1542, 0.6666667
        %v1553 = vadd.f32 %v1543, 0.6666667
        %v1554 = vadd.f32 %v1544, 0.6666667
        %v1555 = vadd.f32 %v1545, 0.6666667
        %v1556 = vadd.f32 %v1546, 0.6666667
        %v1557 = vsub.f32 2.0, %v1497
        %v1558 = vsub.f32 2.0, %v1498
        %v1559 = vsub.f32 2.0, %v1499
        %v1560 = vsub.f32 2.0, %v1500
        %v1561 = vsub.f32 2.0, %v1501
        %v1562 = vsub.f32 2.0, %v1502
        %v1563 = vsub.f32 2.0, %v1503
        %v1564 = vsub.f32 2.0, %v1504
        %v1565 = vsub.f32 2.0, %v1505
        %v1566 = vsub.f32 2.0, %v1506
        %v1567 = vmax.f32 %v1557, 0.0
        %v1568 = vmax.f32 %v1558, 0.0
        %v1569 = vmax.f32 %v1559, 0.0
        %v1570 = vmax.f32 %v1560, 0.0
        %v1571 = vmax.f32 %v1561, 0.0
        %v1572 = vmax.f32 %v1562, 0.0
        %v1573 = vmax.f32 %v1563, 0.0
        %v1574 = vmax.f32 %v1564, 0.0
        %v1575 = vmax.f32 %v1565, 0.0
        %v1576 = vmax.f32 %v1566, 0.0
        %v1577 = vmul.f32 %v1567, %v1567
        %v1578 = vmul.f32 %v1568, %v1568
        %v1579 = vmul.f32 %v1569, %v1569
        %v1580 = vmul.f32 %v1570, %v1570
        %v1581 = vmul.f32 %v1571, %v1571
        %v1582 = vmul.f32 %v1572, %v1572
        %v1583 = vmul.f32 %v1573, %v1573
        %v1584 = vmul.f32 %v1574, %v1574
        %v1585 = vmul.f32 %v1575, %v1575
        %v1586 = vmul.f32 %v1576, %v1576
        %v1587 = vmul.f32 %v1567, 0.16666667
        %v1588 = vmul.f32 %v1568, 0.16666667
        %v1589 = vmul.f32 %v1569, 0.16666667
        %v1590 = vmul.f32 %v1570, 0.16666667
        %v1591 = vmul.f32 %v1571, 0.16666667
        %v1592 = vmul.f32 %v1572, 0.16666667
        %v1593 = vmul.f32 %v1573, 0.16666667
        %v1594 = vmul.f32 %v1574, 0.16666667
        %v1595 = vmul.f32 %v1575, 0.16666667
        %v1596 = vmul.f32 %v1576, 0.16666667
        %v1597 = vmul.f32 %v1577, %v1587
        %v1598 = vmul.f32 %v1578, %v1588
        %v1599 = vmul.f32 %v1579, %v1589
        %v1600 = vmul.f32 %v1580, %v1590
        %v1601 = vmul.f32 %v1581, %v1591
        %v1602 = vmul.f32 %v1582, %v1592
        %v1603 = vmul.f32 %v1583, %v1593
        %v1604 = vmul.f32 %v1584, %v1594
        %v1605 = vmul.f32 %v1585, %v1595
        %v1606 = vmul.f32 %v1586, %v1596
        %vm1607 = vcmp.lt.f32.partialorder %v1497, 1.0
        %vm1608 = vcmp.lt.f32.partialorder %v1498, 1.0
        %vm1609 = vcmp.lt.f32.partialorder %v1499, 1.0
        %vm1610 = vcmp.lt.f32.partialorder %v1500, 1.0
        %vm1611 = vcmp.lt.f32.partialorder %v1501, 1.0
        %vm1612 = vcmp.lt.f32.partialorder %v1502, 1.0
        %vm1613 = vcmp.lt.f32.partialorder %v1503, 1.0
        %vm1614 = vcmp.lt.f32.partialorder %v1504, 1.0
        %vm1615 = vcmp.lt.f32.partialorder %v1505, 1.0
        %vm1616 = vcmp.lt.f32.partialorder %v1506, 1.0
        %v1617 = vsel %vm1607, %v1547, %v1597
        %v1618 = vsel %vm1608, %v1548, %v1598
        %v1619 = vsel %vm1609, %v1549, %v1599
        %v1620 = vsel %vm1610, %v1550, %v1600
        %v1621 = vsel %vm1611, %v1551, %v1601
        %v1622 = vsel %vm1612, %v1552, %v1602
        %v1623 = vsel %vm1613, %v1553, %v1603
        %v1624 = vsel %vm1614, %v1554, %v1604
        %v1625 = vsel %vm1615, %v1555, %v1605
        %v1626 = vsel %vm1616, %v1556, %v1606
        %s1627 = scalar_lea.vmem [#allocation5], 24
        %v1628 = vld [vmem:[%s1627] sm:$0xf]
        %v1630 = vsel %vm429, %v1628, 0
        %v1633 = vsel %vm433, %v1625, 0
        %v1636 = vsel %vm433, %v1626, 0
        %1638 = vmatprep.subr.mxu0 %v1618
        %1639 = vmatpush1.msra.mxu0 %v1617
        %1640 = vmatprep.subr.mxu0 %v1620
        %1641 = vmatpush1.msra.mxu0 %v1619
        %1642 = vmatprep.subr.mxu0 %v1622
        %1643 = vmatpush1.msra.mxu0 %v1621
        %1644 = vmatprep.subr.mxu0 %v1624
        %1645 = vmatpush1.msra.mxu0 %v1623
        %1646 = vmatprep.subr.mxu0 %v1636
        %1647 = vmatpush1.msra.mxu0 %v1633
        %1648 = vmatprep.subr.mxu0 0.0
        %1649 = vmatpush1.msra.mxu0 0.0
        %1650 = vmatprep.subr.mxu0 0.0
        %1651 = vmatpush1.msra.mxu0 0.0
        %1652 = vmatprep.subr.mxu0 0.0
        %1653 = vmatpush1.msra.mxu0 0.0
        %1654 = vmatprep.subr.mxu0 0.0
        %1655 = vmatpush1.msra.mxu0 0.0
        %1656 = vmatprep.subr.mxu0 0.0
        %1657 = vmatpush1.msra.mxu0 0.0
        %1658 = vmatprep.subr.mxu0 0.0
        %1659 = vmatpush1.msra.mxu0 0.0
        %1660 = vmatprep.subr.mxu0 0.0
        %1661 = vmatpush1.msra.mxu0 0.0
        %1662 = vmatprep.subr.mxu0 0.0
        %1663 = vmatpush1.msra.mxu0 0.0
        %1664 = vmatprep.subr.mxu0 0.0
        %1665 = vmatpush1.msra.mxu0 0.0
        %1666 = vmatprep.subr.mxu0 0.0
        %1667 = vmatpush1.msra.mxu0 0.0
        %1668 = vmatprep.subr.mxu0 0.0
        %1669 = vmatpush1.msra.mxu0 0.0
        %1670 = vmatprep.subr.mxu0 0.0
        %1671 = vmatpush1.msra.mxu0 0.0
        %1672 = vmatprep.subr.mxu0 0.0
        %1673 = vmatpush1.msra.mxu0 0.0
        %1674 = vmatprep.subr.mxu0 0.0
        %1675 = vmatpush1.msra.mxu0 0.0
        %1676 = vmatprep.subr.mxu0 0.0
        %1677 = vmatpush1.msra.mxu0 0.0
        %1678 = vmatprep.subr.mxu0 0.0
        %1679 = vmatpush1.msra.mxu0 0.0
        %1680 = vmatprep.subr.mxu0 0.0
        %1681 = vmatpush1.msra.mxu0 0.0
        %1682 = vmatprep.subr.mxu0 0.0
        %1683 = vmatpush1.msra.mxu0 0.0
        %1684 = vmatprep.subr.mxu0 0.0
        %1685 = vmatpush1.msra.mxu0 0.0
        %1686 = vmatprep.subr.mxu0 0.0
        %1687 = vmatpush1.msra.mxu0 0.0
        %1688 = vmatprep.subr.mxu0 0.0
        %1689 = vmatpush1.msra.mxu0 0.0
        %1690 = vmatprep.subr.mxu0 0.0
        %1691 = vmatpush1.msra.mxu0 0.0
        %1692 = vmatprep.subr.mxu0 0.0
        %1693 = vmatpush1.msra.mxu0 0.0
        %1694 = vmatprep.subr.mxu0 0.0
        %1695 = vmatpush1.msra.mxu0 0.0
        %1696 = vmatprep.subr.mxu0 0.0
        %1697 = vmatpush1.msra.mxu0 0.0
        %1698 = vmatprep.subr.mxu0 0.0
        %1699 = vmatpush1.msra.mxu0 0.0
        %1700 = vmatprep.subr.mxu0 0.0
        %1701 = vmatpush1.msra.mxu0 0.0
        %1702 = vmatprep.mubr.f32.mxu0 0.0
        %1703 = vmatmul.mubr.f32.gmra.mrb[0].mxu0 %v1630
        %v1704 = vpop.f32.mrb[0].mxu0
        %v1705 = vadd.f32 0.0, %v1704
        %v1706 = vpop.f32.mrb[0].mxu0
        %v1707 = vadd.f32 0.0, %v1706
        %1708 = vdwg.mxu0
        %v1709 = vadd.f32 %v1485, %v1705
        %v1710 = vadd.f32 %v1486, %v1707
        %v1711 = vsub.f32 %v287, 6.0
        %v1712 = vsub.f32 %v288, 6.0
        %v1713 = vsub.f32 %v289, 6.0
        %v1714 = vsub.f32 %v290, 6.0
        %v1715 = vsub.f32 %v291, 6.0
        %v1716 = vsub.f32 %v292, 6.0
        %v1717 = vsub.f32 %v293, 6.0
        %v1718 = vsub.f32 %v294, 6.0
        %v1719 = vsub.f32 %v295, 6.0
        %v1720 = vsub.f32 %v296, 6.0
        %v1721 = vand.u32 2147483647, %v1711
        %v1722 = vand.u32 2147483647, %v1712
        %v1723 = vand.u32 2147483647, %v1713
        %v1724 = vand.u32 2147483647, %v1714
        %v1725 = vand.u32 2147483647, %v1715
        %v1726 = vand.u32 2147483647, %v1716
        %v1727 = vand.u32 2147483647, %v1717
        %v1728 = vand.u32 2147483647, %v1718
        %v1729 = vand.u32 2147483647, %v1719
        %v1730 = vand.u32 2147483647, %v1720
        %v1731 = vmul.f32 %v1721, %v1721
        %v1732 = vmul.f32 %v1722, %v1722
        %v1733 = vmul.f32 %v1723, %v1723
        %v1734 = vmul.f32 %v1724, %v1724
        %v1735 = vmul.f32 %v1725, %v1725
        %v1736 = vmul.f32 %v1726, %v1726
        %v1737 = vmul.f32 %v1727, %v1727
        %v1738 = vmul.f32 %v1728, %v1728
        %v1739 = vmul.f32 %v1729, %v1729
        %v1740 = vmul.f32 %v1730, %v1730
        %v1741 = vmul.f32 %v1721, 0.5
        %v1742 = vmul.f32 %v1722, 0.5
        %v1743 = vmul.f32 %v1723, 0.5
        %v1744 = vmul.f32 %v1724, 0.5
        %v1745 = vmul.f32 %v1725, 0.5
        %v1746 = vmul.f32 %v1726, 0.5
        %v1747 = vmul.f32 %v1727, 0.5
        %v1748 = vmul.f32 %v1728, 0.5
        %v1749 = vmul.f32 %v1729, 0.5
        %v1750 = vmul.f32 %v1730, 0.5
        %v1751 = vsub.f32 %v1741, 1.0
        %v1752 = vsub.f32 %v1742, 1.0
        %v1753 = vsub.f32 %v1743, 1.0
        %v1754 = vsub.f32 %v1744, 1.0
        %v1755 = vsub.f32 %v1745, 1.0
        %v1756 = vsub.f32 %v1746, 1.0
        %v1757 = vsub.f32 %v1747, 1.0
        %v1758 = vsub.f32 %v1748, 1.0
        %v1759 = vsub.f32 %v1749, 1.0
        %v1760 = vsub.f32 %v1750, 1.0
        %v1761 = vmul.f32 %v1751, %v1731
        %v1762 = vmul.f32 %v1752, %v1732
        %v1763 = vmul.f32 %v1753, %v1733
        %v1764 = vmul.f32 %v1754, %v1734
        %v1765 = vmul.f32 %v1755, %v1735
        %v1766 = vmul.f32 %v1756, %v1736
        %v1767 = vmul.f32 %v1757, %v1737
        %v1768 = vmul.f32 %v1758, %v1738
        %v1769 = vmul.f32 %v1759, %v1739
        %v1770 = vmul.f32 %v1760, %v1740
        %v1771 = vadd.f32 %v1761, 0.6666667
        %v1772 = vadd.f32 %v1762, 0.6666667
        %v1773 = vadd.f32 %v1763, 0.6666667
        %v1774 = vadd.f32 %v1764, 0.6666667
        %v1775 = vadd.f32 %v1765, 0.6666667
        %v1776 = vadd.f32 %v1766, 0.6666667
        %v1777 = vadd.f32 %v1767, 0.6666667
        %v1778 = vadd.f32 %v1768, 0.6666667
        %v1779 = vadd.f32 %v1769, 0.6666667
        %v1780 = vadd.f32 %v1770, 0.6666667
        %v1781 = vsub.f32 2.0, %v1721
        %v1782 = vsub.f32 2.0, %v1722
        %v1783 = vsub.f32 2.0, %v1723
        %v1784 = vsub.f32 2.0, %v1724
        %v1785 = vsub.f32 2.0, %v1725
        %v1786 = vsub.f32 2.0, %v1726
        %v1787 = vsub.f32 2.0, %v1727
        %v1788 = vsub.f32 2.0, %v1728
        %v1789 = vsub.f32 2.0, %v1729
        %v1790 = vsub.f32 2.0, %v1730
        %v1791 = vmax.f32 %v1781, 0.0
        %v1792 = vmax.f32 %v1782, 0.0
        %v1793 = vmax.f32 %v1783, 0.0
        %v1794 = vmax.f32 %v1784, 0.0
        %v1795 = vmax.f32 %v1785, 0.0
        %v1796 = vmax.f32 %v1786, 0.0
        %v1797 = vmax.f32 %v1787, 0.0
        %v1798 = vmax.f32 %v1788, 0.0
        %v1799 = vmax.f32 %v1789, 0.0
        %v1800 = vmax.f32 %v1790, 0.0
        %v1801 = vmul.f32 %v1791, %v1791
        %v1802 = vmul.f32 %v1792, %v1792
        %v1803 = vmul.f32 %v1793, %v1793
        %v1804 = vmul.f32 %v1794, %v1794
        %v1805 = vmul.f32 %v1795, %v1795
        %v1806 = vmul.f32 %v1796, %v1796
        %v1807 = vmul.f32 %v1797, %v1797
        %v1808 = vmul.f32 %v1798, %v1798
        %v1809 = vmul.f32 %v1799, %v1799
        %v1810 = vmul.f32 %v1800, %v1800
        %v1811 = vmul.f32 %v1791, 0.16666667
        %v1812 = vmul.f32 %v1792, 0.16666667
        %v1813 = vmul.f32 %v1793, 0.16666667
        %v1814 = vmul.f32 %v1794, 0.16666667
        %v1815 = vmul.f32 %v1795, 0.16666667
        %v1816 = vmul.f32 %v1796, 0.16666667
        %v1817 = vmul.f32 %v1797, 0.16666667
        %v1818 = vmul.f32 %v1798, 0.16666667
        %v1819 = vmul.f32 %v1799, 0.16666667
        %v1820 = vmul.f32 %v1800, 0.16666667
        %v1821 = vmul.f32 %v1801, %v1811
        %v1822 = vmul.f32 %v1802, %v1812
        %v1823 = vmul.f32 %v1803, %v1813
        %v1824 = vmul.f32 %v1804, %v1814
        %v1825 = vmul.f32 %v1805, %v1815
        %v1826 = vmul.f32 %v1806, %v1816
        %v1827 = vmul.f32 %v1807, %v1817
        %v1828 = vmul.f32 %v1808, %v1818
        %v1829 = vmul.f32 %v1809, %v1819
        %v1830 = vmul.f32 %v1810, %v1820
        %vm1831 = vcmp.lt.f32.partialorder %v1721, 1.0
        %vm1832 = vcmp.lt.f32.partialorder %v1722, 1.0
        %vm1833 = vcmp.lt.f32.partialorder %v1723, 1.0
        %vm1834 = vcmp.lt.f32.partialorder %v1724, 1.0
        %vm1835 = vcmp.lt.f32.partialorder %v1725, 1.0
        %vm1836 = vcmp.lt.f32.partialorder %v1726, 1.0
        %vm1837 = vcmp.lt.f32.partialorder %v1727, 1.0
        %vm1838 = vcmp.lt.f32.partialorder %v1728, 1.0
        %vm1839 = vcmp.lt.f32.partialorder %v1729, 1.0
        %vm1840 = vcmp.lt.f32.partialorder %v1730, 1.0
        %v1841 = vsel %vm1831, %v1771, %v1821
        %v1842 = vsel %vm1832, %v1772, %v1822
        %v1843 = vsel %vm1833, %v1773, %v1823
        %v1844 = vsel %vm1834, %v1774, %v1824
        %v1845 = vsel %vm1835, %v1775, %v1825
        %v1846 = vsel %vm1836, %v1776, %v1826
        %v1847 = vsel %vm1837, %v1777, %v1827
        %v1848 = vsel %vm1838, %v1778, %v1828
        %v1849 = vsel %vm1839, %v1779, %v1829
        %v1850 = vsel %vm1840, %v1780, %v1830
        %s1851 = scalar_lea.vmem [#allocation5], 28
        %v1852 = vld [vmem:[%s1851] sm:$0xf]
        %v1854 = vsel %vm429, %v1852, 0
        %v1857 = vsel %vm433, %v1849, 0
        %v1860 = vsel %vm433, %v1850, 0
        %1862 = vmatprep.subr.mxu0 %v1842
        %1863 = vmatpush1.msra.mxu0 %v1841
        %1864 = vmatprep.subr.mxu0 %v1844
        %1865 = vmatpush1.msra.mxu0 %v1843
        %1866 = vmatprep.subr.mxu0 %v1846
        %1867 = vmatpush1.msra.mxu0 %v1845
        %1868 = vmatprep.subr.mxu0 %v1848
        %1869 = vmatpush1.msra.mxu0 %v1847
        %1870 = vmatprep.subr.mxu0 %v1860
        %1871 = vmatpush1.msra.mxu0 %v1857
        %1872 = vmatprep.subr.mxu0 0.0
        %1873 = vmatpush1.msra.mxu0 0.0
        %1874 = vmatprep.subr.mxu0 0.0
        %1875 = vmatpush1.msra.mxu0 0.0
        %1876 = vmatprep.subr.mxu0 0.0
        %1877 = vmatpush1.msra.mxu0 0.0
        %1878 = vmatprep.subr.mxu0 0.0
        %1879 = vmatpush1.msra.mxu0 0.0
        %1880 = vmatprep.subr.mxu0 0.0
        %1881 = vmatpush1.msra.mxu0 0.0
        %1882 = vmatprep.subr.mxu0 0.0
        %1883 = vmatpush1.msra.mxu0 0.0
        %1884 = vmatprep.subr.mxu0 0.0
        %1885 = vmatpush1.msra.mxu0 0.0
        %1886 = vmatprep.subr.mxu0 0.0
        %1887 = vmatpush1.msra.mxu0 0.0
        %1888 = vmatprep.subr.mxu0 0.0
        %1889 = vmatpush1.msra.mxu0 0.0
        %1890 = vmatprep.subr.mxu0 0.0
        %1891 = vmatpush1.msra.mxu0 0.0
        %1892 = vmatprep.subr.mxu0 0.0
        %1893 = vmatpush1.msra.mxu0 0.0
        %1894 = vmatprep.subr.mxu0 0.0
        %1895 = vmatpush1.msra.mxu0 0.0
        %1896 = vmatprep.subr.mxu0 0.0
        %1897 = vmatpush1.msra.mxu0 0.0
        %1898 = vmatprep.subr.mxu0 0.0
        %1899 = vmatpush1.msra.mxu0 0.0
        %1900 = vmatprep.subr.mxu0 0.0
        %1901 = vmatpush1.msra.mxu0 0.0
        %1902 = vmatprep.subr.mxu0 0.0
        %1903 = vmatpush1.msra.mxu0 0.0
        %1904 = vmatprep.subr.mxu0 0.0
        %1905 = vmatpush1.msra.mxu0 0.0
        %1906 = vmatprep.subr.mxu0 0.0
        %1907 = vmatpush1.msra.mxu0 0.0
        %1908 = vmatprep.subr.mxu0 0.0
        %1909 = vmatpush1.msra.mxu0 0.0
        %1910 = vmatprep.subr.mxu0 0.0
        %1911 = vmatpush1.msra.mxu0 0.0
        %1912 = vmatprep.subr.mxu0 0.0
        %1913 = vmatpush1.msra.mxu0 0.0
        %1914 = vmatprep.subr.mxu0 0.0
        %1915 = vmatpush1.msra.mxu0 0.0
        %1916 = vmatprep.subr.mxu0 0.0
        %1917 = vmatpush1.msra.mxu0 0.0
        %1918 = vmatprep.subr.mxu0 0.0
        %1919 = vmatpush1.msra.mxu0 0.0
        %1920 = vmatprep.subr.mxu0 0.0
        %1921 = vmatpush1.msra.mxu0 0.0
        %1922 = vmatprep.subr.mxu0 0.0
        %1923 = vmatpush1.msra.mxu0 0.0
        %1924 = vmatprep.subr.mxu0 0.0
        %1925 = vmatpush1.msra.mxu0 0.0
        %1926 = vmatprep.mubr.f32.mxu0 0.0
        %1927 = vmatmul.mubr.f32.gmra.mrb[0].mxu0 %v1854
        %v1928 = vpop.f32.mrb[0].mxu0
        %v1929 = vadd.f32 0.0, %v1928
        %v1930 = vpop.f32.mrb[0].mxu0
        %v1931 = vadd.f32 0.0, %v1930
        %1932 = vdwg.mxu0
        %v1933 = vadd.f32 %v1709, %v1929
        %v1934 = vadd.f32 %v1710, %v1931
        %v1935 = vsub.f32 %v287, 7.0
        %v1936 = vsub.f32 %v288, 7.0
        %v1937 = vsub.f32 %v289, 7.0
        %v1938 = vsub.f32 %v290, 7.0
        %v1939 = vsub.f32 %v291, 7.0
        %v1940 = vsub.f32 %v292, 7.0
        %v1941 = vsub.f32 %v293, 7.0
        %v1942 = vsub.f32 %v294, 7.0
        %v1943 = vsub.f32 %v295, 7.0
        %v1944 = vsub.f32 %v296, 7.0
        %v1945 = vand.u32 2147483647, %v1935
        %v1946 = vand.u32 2147483647, %v1936
        %v1947 = vand.u32 2147483647, %v1937
        %v1948 = vand.u32 2147483647, %v1938
        %v1949 = vand.u32 2147483647, %v1939
        %v1950 = vand.u32 2147483647, %v1940
        %v1951 = vand.u32 2147483647, %v1941
        %v1952 = vand.u32 2147483647, %v1942
        %v1953 = vand.u32 2147483647, %v1943
        %v1954 = vand.u32 2147483647, %v1944
        %v1955 = vmul.f32 %v1945, %v1945
        %v1956 = vmul.f32 %v1946, %v1946
        %v1957 = vmul.f32 %v1947, %v1947
        %v1958 = vmul.f32 %v1948, %v1948
        %v1959 = vmul.f32 %v1949, %v1949
        %v1960 = vmul.f32 %v1950, %v1950
        %v1961 = vmul.f32 %v1951, %v1951
        %v1962 = vmul.f32 %v1952, %v1952
        %v1963 = vmul.f32 %v1953, %v1953
        %v1964 = vmul.f32 %v1954, %v1954
        %v1965 = vmul.f32 %v1945, 0.5
        %v1966 = vmul.f32 %v1946, 0.5
        %v1967 = vmul.f32 %v1947, 0.5
        %v1968 = vmul.f32 %v1948, 0.5
        %v1969 = vmul.f32 %v1949, 0.5
        %v1970 = vmul.f32 %v1950, 0.5
        %v1971 = vmul.f32 %v1951, 0.5
        %v1972 = vmul.f32 %v1952, 0.5
        %v1973 = vmul.f32 %v1953, 0.5
        %v1974 = vmul.f32 %v1954, 0.5
        %v1975 = vsub.f32 %v1965, 1.0
        %v1976 = vsub.f32 %v1966, 1.0
        %v1977 = vsub.f32 %v1967, 1.0
        %v1978 = vsub.f32 %v1968, 1.0
        %v1979 = vsub.f32 %v1969, 1.0
        %v1980 = vsub.f32 %v1970, 1.0
        %v1981 = vsub.f32 %v1971, 1.0
        %v1982 = vsub.f32 %v1972, 1.0
        %v1983 = vsub.f32 %v1973, 1.0
        %v1984 = vsub.f32 %v1974, 1.0
        %v1985 = vmul.f32 %v1975, %v1955
        %v1986 = vmul.f32 %v1976, %v1956
        %v1987 = vmul.f32 %v1977, %v1957
        %v1988 = vmul.f32 %v1978, %v1958
        %v1989 = vmul.f32 %v1979, %v1959
        %v1990 = vmul.f32 %v1980, %v1960
        %v1991 = vmul.f32 %v1981, %v1961
        %v1992 = vmul.f32 %v1982, %v1962
        %v1993 = vmul.f32 %v1983, %v1963
        %v1994 = vmul.f32 %v1984, %v1964
        %v1995 = vadd.f32 %v1985, 0.6666667
        %v1996 = vadd.f32 %v1986, 0.6666667
        %v1997 = vadd.f32 %v1987, 0.6666667
        %v1998 = vadd.f32 %v1988, 0.6666667
        %v1999 = vadd.f32 %v1989, 0.6666667
        %v2000 = vadd.f32 %v1990, 0.6666667
        %v2001 = vadd.f32 %v1991, 0.6666667
        %v2002 = vadd.f32 %v1992, 0.6666667
        %v2003 = vadd.f32 %v1993, 0.6666667
        %v2004 = vadd.f32 %v1994, 0.6666667
        %v2005 = vsub.f32 2.0, %v1945
        %v2006 = vsub.f32 2.0, %v1946
        %v2007 = vsub.f32 2.0, %v1947
        %v2008 = vsub.f32 2.0, %v1948
        %v2009 = vsub.f32 2.0, %v1949
        %v2010 = vsub.f32 2.0, %v1950
        %v2011 = vsub.f32 2.0, %v1951
        %v2012 = vsub.f32 2.0, %v1952
        %v2013 = vsub.f32 2.0, %v1953
        %v2014 = vsub.f32 2.0, %v1954
        %v2015 = vmax.f32 %v2005, 0.0
        %v2016 = vmax.f32 %v2006, 0.0
        %v2017 = vmax.f32 %v2007, 0.0
        %v2018 = vmax.f32 %v2008, 0.0
        %v2019 = vmax.f32 %v2009, 0.0
        %v2020 = vmax.f32 %v2010, 0.0
        %v2021 = vmax.f32 %v2011, 0.0
        %v2022 = vmax.f32 %v2012, 0.0
        %v2023 = vmax.f32 %v2013, 0.0
        %v2024 = vmax.f32 %v2014, 0.0
        %v2025 = vmul.f32 %v2015, %v2015
        %v2026 = vmul.f32 %v2016, %v2016
        %v2027 = vmul.f32 %v2017, %v2017
        %v2028 = vmul.f32 %v2018, %v2018
        %v2029 = vmul.f32 %v2019, %v2019
        %v2030 = vmul.f32 %v2020, %v2020
        %v2031 = vmul.f32 %v2021, %v2021
        %v2032 = vmul.f32 %v2022, %v2022
        %v2033 = vmul.f32 %v2023, %v2023
        %v2034 = vmul.f32 %v2024, %v2024
        %v2035 = vmul.f32 %v2015, 0.16666667
        %v2036 = vmul.f32 %v2016, 0.16666667
        %v2037 = vmul.f32 %v2017, 0.16666667
        %v2038 = vmul.f32 %v2018, 0.16666667
        %v2039 = vmul.f32 %v2019, 0.16666667
        %v2040 = vmul.f32 %v2020, 0.16666667
        %v2041 = vmul.f32 %v2021, 0.16666667
        %v2042 = vmul.f32 %v2022, 0.16666667
        %v2043 = vmul.f32 %v2023, 0.16666667
        %v2044 = vmul.f32 %v2024, 0.16666667
        %v2045 = vmul.f32 %v2025, %v2035
        %v2046 = vmul.f32 %v2026, %v2036
        %v2047 = vmul.f32 %v2027, %v2037
        %v2048 = vmul.f32 %v2028, %v2038
        %v2049 = vmul.f32 %v2029, %v2039
        %v2050 = vmul.f32 %v2030, %v2040
        %v2051 = vmul.f32 %v2031, %v2041
        %v2052 = vmul.f32 %v2032, %v2042
        %v2053 = vmul.f32 %v2033, %v2043
        %v2054 = vmul.f32 %v2034, %v2044
        %vm2055 = vcmp.lt.f32.partialorder %v1945, 1.0
        %vm2056 = vcmp.lt.f32.partialorder %v1946, 1.0
        %vm2057 = vcmp.lt.f32.partialorder %v1947, 1.0
        %vm2058 = vcmp.lt.f32.partialorder %v1948, 1.0
        %vm2059 = vcmp.lt.f32.partialorder %v1949, 1.0
        %vm2060 = vcmp.lt.f32.partialorder %v1950, 1.0
        %vm2061 = vcmp.lt.f32.partialorder %v1951, 1.0
        %vm2062 = vcmp.lt.f32.partialorder %v1952, 1.0
        %vm2063 = vcmp.lt.f32.partialorder %v1953, 1.0
        %vm2064 = vcmp.lt.f32.partialorder %v1954, 1.0
        %v2065 = vsel %vm2055, %v1995, %v2045
        %v2066 = vsel %vm2056, %v1996, %v2046
        %v2067 = vsel %vm2057, %v1997, %v2047
        %v2068 = vsel %vm2058, %v1998, %v2048
        %v2069 = vsel %vm2059, %v1999, %v2049
        %v2070 = vsel %vm2060, %v2000, %v2050
        %v2071 = vsel %vm2061, %v2001, %v2051
        %v2072 = vsel %vm2062, %v2002, %v2052
        %v2073 = vsel %vm2063, %v2003, %v2053
        %v2074 = vsel %vm2064, %v2004, %v2054
        %s2075 = scalar_lea.vmem [#allocation5], 32
        %v2076 = vld [vmem:[%s2075] sm:$0xf]
        %v2078 = vsel %vm429, %v2076, 0
        %v2081 = vsel %vm433, %v2073, 0
        %v2084 = vsel %vm433, %v2074, 0
        %2086 = vmatprep.subr.mxu0 %v2066
        %2087 = vmatpush1.msra.mxu0 %v2065
        %2088 = vmatprep.subr.mxu0 %v2068
        %2089 = vmatpush1.msra.mxu0 %v2067
        %2090 = vmatprep.subr.mxu0 %v2070
        %2091 = vmatpush1.msra.mxu0 %v2069
        %2092 = vmatprep.subr.mxu0 %v2072
        %2093 = vmatpush1.msra.mxu0 %v2071
        %2094 = vmatprep.subr.mxu0 %v2084
        %2095 = vmatpush1.msra.mxu0 %v2081
        %2096 = vmatprep.subr.mxu0 0.0
        %2097 = vmatpush1.msra.mxu0 0.0
        %2098 = vmatprep.subr.mxu0 0.0
        %2099 = vmatpush1.msra.mxu0 0.0
        %2100 = vmatprep.subr.mxu0 0.0
        %2101 = vmatpush1.msra.mxu0 0.0
        %2102 = vmatprep.subr.mxu0 0.0
        %2103 = vmatpush1.msra.mxu0 0.0
        %2104 = vmatprep.subr.mxu0 0.0
        %2105 = vmatpush1.msra.mxu0 0.0
        %2106 = vmatprep.subr.mxu0 0.0
        %2107 = vmatpush1.msra.mxu0 0.0
        %2108 = vmatprep.subr.mxu0 0.0
        %2109 = vmatpush1.msra.mxu0 0.0
        %2110 = vmatprep.subr.mxu0 0.0
        %2111 = vmatpush1.msra.mxu0 0.0
        %2112 = vmatprep.subr.mxu0 0.0
        %2113 = vmatpush1.msra.mxu0 0.0
        %2114 = vmatprep.subr.mxu0 0.0
        %2115 = vmatpush1.msra.mxu0 0.0
        %2116 = vmatprep.subr.mxu0 0.0
        %2117 = vmatpush1.msra.mxu0 0.0
        %2118 = vmatprep.subr.mxu0 0.0
        %2119 = vmatpush1.msra.mxu0 0.0
        %2120 = vmatprep.subr.mxu0 0.0
        %2121 = vmatpush1.msra.mxu0 0.0
        %2122 = vmatprep.subr.mxu0 0.0
        %2123 = vmatpush1.msra.mxu0 0.0
        %2124 = vmatprep.subr.mxu0 0.0
        %2125 = vmatpush1.msra.mxu0 0.0
        %2126 = vmatprep.subr.mxu0 0.0
        %2127 = vmatpush1.msra.mxu0 0.0
        %2128 = vmatprep.subr.mxu0 0.0
        %2129 = vmatpush1.msra.mxu0 0.0
        %2130 = vmatprep.subr.mxu0 0.0
        %2131 = vmatpush1.msra.mxu0 0.0
        %2132 = vmatprep.subr.mxu0 0.0
        %2133 = vmatpush1.msra.mxu0 0.0
        %2134 = vmatprep.subr.mxu0 0.0
        %2135 = vmatpush1.msra.mxu0 0.0
        %2136 = vmatprep.subr.mxu0 0.0
        %2137 = vmatpush1.msra.mxu0 0.0
        %2138 = vmatprep.subr.mxu0 0.0
        %2139 = vmatpush1.msra.mxu0 0.0
        %2140 = vmatprep.subr.mxu0 0.0
        %2141 = vmatpush1.msra.mxu0 0.0
        %2142 = vmatprep.subr.mxu0 0.0
        %2143 = vmatpush1.msra.mxu0 0.0
        %2144 = vmatprep.subr.mxu0 0.0
        %2145 = vmatpush1.msra.mxu0 0.0
        %2146 = vmatprep.subr.mxu0 0.0
        %2147 = vmatpush1.msra.mxu0 0.0
        %2148 = vmatprep.subr.mxu0 0.0
        %2149 = vmatpush1.msra.mxu0 0.0
        %2150 = vmatprep.mubr.f32.mxu0 0.0
        %2151 = vmatmul.mubr.f32.gmra.mrb[0].mxu0 %v2078
        %v2152 = vpop.f32.mrb[0].mxu0
        %v2153 = vadd.f32 0.0, %v2152
        %v2154 = vpop.f32.mrb[0].mxu0
        %v2155 = vadd.f32 0.0, %v2154
        %2156 = vdwg.mxu0
        %v2157 = vadd.f32 %v1933, %v2153
        %v2158 = vadd.f32 %v1934, %v2155
        %v2159 = vld [vmem:[%s2] sm:$0xf]
        %2161 = vset.pattern.permute.xlu0 0
        %2162 = vperm.xlu0 %2161, %v2159
        %v2163 = vpop.permute.xlu0 %2162
        %v2165 = vadd.f32 %v2157, %v2163
        %v2166 = vadd.f32 %v2158, %v2163
        %v2169 = vcombine.low %v2165, %v2166
        %2171 = vst [vmem:[%s203] sm:$0xff] %v2169
        %s2172 = sand.u32 %s97, 1
        %s2173 = scalar_lea.sflag [#allocation4], %s2172
        %s2174 = sand.u32 %s97, 1
        %s2175 = smul.addr %s2174, 8
        %s2176 = scalar_lea.vmem [#allocation7], %s2175
        // Predicated region
        $region41: #{tpu_custom_call.1} parent=31 // pred_check
          %p2177 = pneg %p107
        $region42: #{tpu_custom_call.1} parent=31 // pred_check_branch
          %2179 = sbr.rel (%p2177) target = $region44
        $region43: #{tpu_custom_call.1} parent=31 // pred_region
          %s2180 = smul.u32 2, %s21
          %s2182 = ssub.s32 128, 128
          %2183 = vsyncadd %s2173, %s2182
          %s2184 = smul.addr %s2180, 64
          %s2185 = scalar_lea.hbm %s3, %s2184
          %s2187 = sshll.u32 %s2176, 4
          %s2188 = int_to_ptr.vmem [resolvable:$true] %s2187
          %2190 = dma.vmem_to_hbm [thread:$0]  %s2188, 128, %s2185, %s2173
        $region44: #{tpu_custom_call.1} parent=31 // pred_fallthru
          _
      $region32: #{tpu_custom_call.1} parent=5 // pred_fallthru
        _
      %p2191 = scmp.le.s32.totalorder 2, %s16
      // Predicated region
      $region45: #{tpu_custom_call.1} parent=5 // pred_check
        %p2192 = pneg %p2191
      $region46: #{tpu_custom_call.1} parent=5 // pred_check_branch
        %2194 = sbr.rel (%p2192) target = $region48
      $region47: #{tpu_custom_call.1} parent=5 // pred_region
        %s2195 = ssub.s32 %s16, 2
        // Predicated region
        $region49: #{tpu_custom_call.1} parent=47 // pred_check
          %p2196 = pneg %p113
        $region50: #{tpu_custom_call.1} parent=47 // pred_check_branch
          %2198 = sbr.rel (%p2196) target = $region52
        $region51: #{tpu_custom_call.1} parent=47 // pred_region
          %s2199 = sand.u32 %s98, 1
          %s2200 = scalar_lea.sflag [#allocation4], %s2199
          %s2201 = sand.u32 %s98, 1
          %s2202 = smul.addr %s2201, 8
          %s2203 = scalar_lea.vmem [#allocation7], %s2202
          %2204 = dma.done %s2200, 128
        $region52: #{tpu_custom_call.1} parent=47 // pred_fallthru
          _
      $region48: #{tpu_custom_call.1} parent=5 // pred_fallthru
        _
    $region6: #{tpu_custom_call.1} parent=1 // loop_footer
      %s20 = sadd.s32 1, %s16
    $region7: #{tpu_custom_call.1} parent=1 // loop_footer_branch
      %15 = sbr.rel target = $region3
    $region8: #{tpu_custom_call.1} parent=1 // loop_exit
      _
    %2205 = vsyncpa [#allocation3], 1
    %s2206 = scalar_lea.sflag [#allocation3], 1
    %2207 = vsyncpa %s2206, 1
    %2208 = vsyncpa [#allocation6], 1
    %2209 = vsyncpa [#allocation4], 1
    %s2210 = scalar_lea.sflag [#allocation4], 1
    %2211 = vsyncpa %s2210, 1

</llo_original>
